<compile_context>
chip_gen: v5e
topology: v5e:2x2
jax: 0.10.0
libtpu: 0.0.40
codegen_flags: <defaults>
</compile_context>

<pallas_src>
import math

import numpy as np
import jax
import jax.numpy as jnp
from jax.experimental import pallas as pl
from jax.experimental.pallas import tpu as pltpu


# ------------------------------ Pallas kernel --------------------------------

def _make_kernel(H, W):
    HW = H * W
    # tap t = (kh, kw); dh = kh-1, dw = kw-1.  tap[i] = h1[i + dh*W + dw] (masked),
    # i.e. roll by shift = -(dh*W + dw)  (jnp.roll semantics: out[i] = x[i - shift]).
    shifts = [(-((t // 3 - 1) * W + (t % 3 - 1))) % HW for t in range(9)]

    def kernel(x_ref, w1_ref, b1_ref, w2_ref, b2_ref, w3_ref, b3_ref,
               sw1_ref, sw2_ref, mask_ref, o_ref):
        x = x_ref[0]                                            # (Cin, HW) f32

        # conv1 (1x1) + bn1 (folded) + relu          (P, Cin) @ (Cin, HW)
        h1 = jnp.dot(w1_ref[...], x.astype(jnp.bfloat16),
                     preferred_element_type=jnp.float32)
        h1 = jnp.maximum(h1 + b1_ref[...], 0.0)                 # (P, HW) f32

        # conv2 (3x3, pad=1, stride=1) + bn2 (folded) + relu.
        # Build the im2col slab (9P, HW) from masked lane-rolls of h1, then one
        # accumulating MXU matmul with K = 9P.
        taps = []
        for t in range(9):
            if t == 4:                                          # center tap: no shift, no mask
                taps.append(h1.astype(jnp.bfloat16))
            else:
                rolled = pltpu.roll(h1, shift=shifts[t], axis=1)
                taps.append((rolled * mask_ref[t]).astype(jnp.bfloat16))
        slab = jnp.concatenate(taps, axis=0)                    # (9P, HW) bf16
        h2 = jnp.dot(w2_ref[...], slab, preferred_element_type=jnp.float32)
        h2 = jnp.maximum(h2 + b2_ref[...], 0.0)                 # (P, HW) f32

        # conv3 (1x1) + bn3 (folded), no relu before SE         (C4, P) @ (P, HW)
        h3 = jnp.dot(w3_ref[...], h2.astype(jnp.bfloat16),
                     preferred_element_type=jnp.float32) + b3_ref[...]   # (C4, HW)

        # SELayer: GAP -> FC -> relu -> FC -> sigmoid -> per-channel scale
        m = jnp.mean(h3, axis=1, keepdims=True)                 # (C4, 1) f32
        s = jnp.maximum(jnp.dot(sw1_ref[...], m.astype(jnp.bfloat16),
                                preferred_element_type=jnp.float32), 0.0)  # (Cr, 1)
        y = jax.nn.sigmoid(jnp.dot(sw2_ref[...], s.astype(jnp.bfloat16),
                                   preferred_element_type=jnp.float32))    # (C4, 1)

        # residual add (identity: downsample is None) + final relu
        out = jnp.maximum(h3 * y + x, 0.0)                      # (C4, HW)
        o_ref[0] = out.astype(o_ref.dtype)

    return kernel


# ------------------------------ JAX wrapper -----------------------------------

def se_bottleneck_forward(params, x_nchw):
    """SEBottleneck(inplanes, planes, stride=1, downsample=None).forward."""
    x = x_nchw.astype(jnp.float32)
    B, Cin, H, W = x.shape
    HW = H * W
    P = params['w1t'].shape[0]
    C4 = params['w3t'].shape[0]
    Cr = params['se_w1t'].shape[0]
    assert Cin == C4, "identity residual requires inplanes == planes * 4"

    # NCHW is already channel-major: (B, Cin, H*W) slab, lane dim = H*W (dense).
    x_cm = x.reshape(B, Cin, HW)

    # Border-validity masks for the 9 taps of the 3x3 conv (compile-time constants).
    hh = np.arange(HW) // W
    ww = np.arange(HW) % W
    mask_np = np.zeros((9, 1, HW), np.float32)
    for t in range(9):
        dh, dw = t // 3 - 1, t % 3 - 1
        mask_np[t, 0] = ((hh + dh >= 0) & (hh + dh < H) &
                         (ww + dw >= 0) & (ww + dw < W)).astype(np.float32)
    mask = jnp.asarray(mask_np)

    out = pl.pallas_call(
        _make_kernel(H, W),
        out_shape=jax.ShapeDtypeStruct((B, C4, HW), jnp.float32),
        grid=(B,),
        in_specs=[
            pl.BlockSpec((1, Cin, HW), lambda b: (b, 0, 0)),
            pl.BlockSpec((P, Cin), lambda b: (0, 0)),
            pl.BlockSpec((P, 1), lambda b: (0, 0)),
            pl.BlockSpec((P, 9 * P), lambda b: (0, 0)),
            pl.BlockSpec((P, 1), lambda b: (0, 0)),
            pl.BlockSpec((C4, P), lambda b: (0, 0)),
            pl.BlockSpec((C4, 1), lambda b: (0, 0)),
            pl.BlockSpec((Cr, C4), lambda b: (0, 0)),
            pl.BlockSpec((C4, Cr), lambda b: (0, 0)),
            pl.BlockSpec((9, 1, HW), lambda b: (0, 0, 0)),
        ],
        out_specs=pl.BlockSpec((1, C4, HW), lambda b: (b, 0, 0)),
        compiler_params=pltpu.CompilerParams(
            dimension_semantics=("parallel",),
            vmem_limit_bytes=32 * 1024 * 1024),
    )(x_cm, params['w1t'], params['b1'], params['w2t'], params['b2'],
      params['w3t'], params['b3'], params['se_w1t'], params['se_w2t'], mask)

    return out.reshape(B, C4, H, W)                  # already NCHW


# --------------------------- Parameter creation --------------------------------

def init_params(key, inplanes=64, planes=16, reduction=16, eps=1e-5):
    """Weights pre-transposed to (C_out, K) matmul layout; BN folded; bf16 MXU operands."""
    C4 = planes * 4
    Cr = max(C4 // reduction, 1)
    ks = jax.random.split(key, 8)

    def conv_w(k, cin, cout, ksz):                   # (ksz*ksz, cin, cout)
        fan_in = cin * ksz * ksz
        return (jax.random.normal(k, (ksz * ksz, cin, cout), jnp.float32)
                * math.sqrt(2.0 / fan_in))

    def bn(k, c):
        k1, k2, k3, k4 = jax.random.split(k, 4)
        gamma = 1.0 + 0.1 * jax.random.normal(k1, (c,), jnp.float32)
        beta = 0.1 * jax.random.normal(k2, (c,), jnp.float32)
        mean = 0.1 * jax.random.normal(k3, (c,), jnp.float32)
        var = jnp.abs(jax.random.normal(k4, (c,), jnp.float32)) + 0.5
        scale = gamma / jnp.sqrt(var + eps)
        return scale, beta - mean * scale

    w1 = conv_w(ks[0], inplanes, planes, 1)[0]       # (Cin, P)
    s1, b1 = bn(ks[1], planes)
    w2 = conv_w(ks[2], planes, planes, 3)            # (9, P, P)
    s2, b2 = bn(ks[3], planes)
    w3 = conv_w(ks[4], planes, C4, 1)[0]             # (P, C4)
    s3, b3 = bn(ks[5], C4)
    se_w1 = jax.random.normal(ks[6], (C4, Cr), jnp.float32) / math.sqrt(C4)
    se_w2 = jax.random.normal(ks[7], (Cr, C4), jnp.float32) / math.sqrt(Cr)

    # Fold BN scale into output channels, transpose so spatial (H*W) is the N dim.
    w1t = (w1 * s1[None, :]).T                                        # (P, Cin)
    w2t = jnp.transpose(w2 * s2[None, None, :], (2, 0, 1)).reshape(planes, 9 * planes)
    w3t = (w3 * s3[None, :]).T                                        # (C4, P)

    return dict(
        w1t=w1t.astype(jnp.bfloat16), b1=b1.reshape(planes, 1),
        w2t=w2t.astype(jnp.bfloat16), b2=b2.reshape(planes, 1),
        w3t=w3t.astype(jnp.bfloat16), b3=b3.reshape(C4, 1),
        se_w1t=se_w1.T.astype(jnp.bfloat16),                          # (Cr, C4)
        se_w2t=se_w2.T.astype(jnp.bfloat16),                          # (C4, Cr)
    )


# ------------------------- Pure-JAX reference (f32) ----------------------------

def se_bottleneck_reference(params, x_nchw):
    x = jnp.transpose(x_nchw, (0, 2, 3, 1)).astype(jnp.float32)       # NHWC
    B, H, W, _ = x.shape
    P = params['w1t'].shape[0]
    w1 = params['w1t'].astype(jnp.float32).T                          # (Cin, P)
    w2 = params['w2t'].astype(jnp.float32).reshape(P, 9, P).transpose(1, 2, 0)  # (9,Pin,Pout)
    w3 = params['w3t'].astype(jnp.float32).T                          # (P, C4)
    b1 = params['b1'][:, 0]; b2 = params['b2'][:, 0]; b3 = params['b3'][:, 0]
    se_w1 = params['se_w1t'].astype(jnp.float32).T                    # (C4, Cr)
    se_w2 = params['se_w2t'].astype(jnp.float32).T                    # (Cr, C4)

    h1 = jnp.maximum(jnp.einsum('bhwc,cp->bhwp', x, w1) + b1, 0.0)
    hp = jnp.pad(h1, ((0, 0), (1, 1), (1, 1), (0, 0)))
    acc = jnp.zeros((B, H, W, P), jnp.float32)
    for t in range(9):
        kh, kw = t // 3, t % 3
        acc = acc + jnp.einsum('bhwc,cp->bhwp',
                               hp[:, kh:kh + H, kw:kw + W, :], w2[t])
    h2 = jnp.maximum(acc + b2, 0.0)
    h3 = jnp.einsum('bhwc,cp->bhwp', h2, w3) + b3
    m = jnp.mean(h3, axis=(1, 2))                                     # (B, C4)
    s = jnp.maximum(m @ se_w1, 0.0)
    y = jax.nn.sigmoid(s @ se_w2)                                     # (B, C4)
    out = jnp.maximum(h3 * y[:, None, None, :] + x, 0.0)
    return jnp.transpose(out, (0, 3, 1, 2))


# ----------------------------------- Main --------------------------------------

if __name__ == "__main__":
    key = jax.random.PRNGKey(0)
    pkey, xkey = jax.random.split(key)
    inplanes, planes, reduction = 64, 16, 16       # planes*4 == inplanes -> identity residual
    params = init_params(pkey, inplanes=inplanes, planes=planes, reduction=reduction)
    x = jax.random.normal(xkey, (2, inplanes, 16, 16), jnp.float32)   # NCHW, like PyTorch

    out = jax.jit(se_bottleneck_forward)(params, x)
    jax.block_until_ready(out)
    assert out.shape == (2, planes * 4, 16, 16) and out.dtype == jnp.float32

    ref = se_bottleneck_reference(params, x)
    max_err = float(jnp.max(jnp.abs(out - ref)))
    assert bool(jnp.all(jnp.isfinite(out))), "non-finite output"
    assert max_err < 0.25, f"max abs err vs f32 reference: {max_err}"
    print("KERNEL_OK")
</pallas_src>

<mosaic_0001>
module attributes {stable_mosaic.version = 11 : i64} {
  func.func @kernel(%arg0: i32, %arg1: memref<1x64x256xf32, #tpu.memory_space<vmem>>, %arg2: memref<16x64xbf16, #tpu.memory_space<vmem>>, %arg3: memref<16x1xf32, #tpu.memory_space<vmem>>, %arg4: memref<16x144xbf16, #tpu.memory_space<vmem>>, %arg5: memref<16x1xf32, #tpu.memory_space<vmem>>, %arg6: memref<64x16xbf16, #tpu.memory_space<vmem>>, %arg7: memref<64x1xf32, #tpu.memory_space<vmem>>, %arg8: memref<4x64xbf16, #tpu.memory_space<vmem>>, %arg9: memref<64x4xbf16, #tpu.memory_space<vmem>>, %arg10: memref<9x1x256xf32, #tpu.memory_space<vmem>>, %arg11: memref<1x64x256xf32, #tpu.memory_space<vmem>>) attributes {dimension_semantics = [#tpu.dimension_semantics<parallel>], iteration_bounds = array<i64: 2>, scalar_prefetch = 0 : i64, scratch_operands = 0 : i64, tpu.core_type = #tpu.core_type<tc>, window_params = [{transform_indices = @transform_0, window_bounds = array<i64: 1, 64, 256>}, {pipeline_mode = #tpu.pipeline_mode<synchronous>, transform_indices = @transform_1, window_bounds = array<i64: 16, 64>}, {pipeline_mode = #tpu.pipeline_mode<synchronous>, transform_indices = @transform_2, window_bounds = array<i64: 16, 1>}, {pipeline_mode = #tpu.pipeline_mode<synchronous>, transform_indices = @transform_3, window_bounds = array<i64: 16, 144>}, {pipeline_mode = #tpu.pipeline_mode<synchronous>, transform_indices = @transform_4, window_bounds = array<i64: 16, 1>}, {pipeline_mode = #tpu.pipeline_mode<synchronous>, transform_indices = @transform_5, window_bounds = array<i64: 64, 16>}, {pipeline_mode = #tpu.pipeline_mode<synchronous>, transform_indices = @transform_6, window_bounds = array<i64: 64, 1>}, {pipeline_mode = #tpu.pipeline_mode<synchronous>, transform_indices = @transform_7, window_bounds = array<i64: 4, 64>}, {pipeline_mode = #tpu.pipeline_mode<synchronous>, transform_indices = @transform_8, window_bounds = array<i64: 64, 4>}, {pipeline_mode = #tpu.pipeline_mode<synchronous>, transform_indices = @transform_9, window_bounds = array<i64: 9, 1, 256>}, {transform_indices = @transform_10, window_bounds = array<i64: 1, 64, 256>}]} {
    %c0 = arith.constant 0 : index
    %c0_0 = arith.constant 0 : index
    %c0_1 = arith.constant 0 : index
    %0 = vector.load %arg1[%c0, %c0_0, %c0_1] : memref<1x64x256xf32, #tpu.memory_space<vmem>>, vector<1x64x256xf32>
    %1 = vector.shape_cast %0 : vector<1x64x256xf32> to vector<64x256xf32>
    %c0_2 = arith.constant 0 : index
    %c0_3 = arith.constant 0 : index
    %2 = vector.load %arg2[%c0_2, %c0_3] : memref<16x64xbf16, #tpu.memory_space<vmem>>, vector<16x64xbf16>
    %3 = arith.truncf %1 : vector<64x256xf32> to vector<64x256xbf16>
    %cst = arith.constant dense<0.000000e+00> : vector<16x256xf32>
    %4 = tpu.matmul %2, %3, %cst {dimension_numbers = #tpu.dot_dimension_numbers<[1], [0], [0], [1], [0, 0, 1, 1], [], []>} : vector<16x64xbf16>, vector<64x256xbf16>, vector<16x256xf32> -> vector<16x256xf32>
    %c0_4 = arith.constant 0 : index
    %c0_5 = arith.constant 0 : index
    %5 = vector.load %arg3[%c0_4, %c0_5] : memref<16x1xf32, #tpu.memory_space<vmem>>, vector<16x1xf32>
    %6 = vector.broadcast %5 : vector<16x1xf32> to vector<16x256xf32>
    %7 = arith.addf %4, %6 : vector<16x256xf32>
    %cst_6 = arith.constant 0.000000e+00 : f32
    %8 = vector.broadcast %cst_6 : f32 to vector<16x256xf32>
    %9 = arith.maximumf %7, %8 : vector<16x256xf32>
    %c17_i32 = arith.constant 17 : i32
    %10 = tpu.dynamic_rotate %9 by %c17_i32 dim 1 : vector<16x256xf32>, i32 -> vector<16x256xf32>
    %c0_7 = arith.constant 0 : index
    %c0_8 = arith.constant 0 : index
    %c0_9 = arith.constant 0 : index
    %11 = vector.load %arg10[%c0_7, %c0_8, %c0_9] : memref<9x1x256xf32, #tpu.memory_space<vmem>>, vector<1x1x256xf32>
    %12 = vector.shape_cast %11 : vector<1x1x256xf32> to vector<1x256xf32>
    %13 = vector.broadcast %12 : vector<1x256xf32> to vector<16x256xf32>
    %14 = arith.mulf %10, %13 : vector<16x256xf32>
    %15 = arith.truncf %14 : vector<16x256xf32> to vector<16x256xbf16>
    %c16_i32 = arith.constant 16 : i32
    %16 = tpu.dynamic_rotate %9 by %c16_i32 dim 1 : vector<16x256xf32>, i32 -> vector<16x256xf32>
    %c1 = arith.constant 1 : index
    %c0_10 = arith.constant 0 : index
    %c0_11 = arith.constant 0 : index
    %17 = vector.load %arg10[%c1, %c0_10, %c0_11] : memref<9x1x256xf32, #tpu.memory_space<vmem>>, vector<1x1x256xf32>
    %18 = vector.shape_cast %17 : vector<1x1x256xf32> to vector<1x256xf32>
    %19 = vector.broadcast %18 : vector<1x256xf32> to vector<16x256xf32>
    %20 = arith.mulf %16, %19 : vector<16x256xf32>
    %21 = arith.truncf %20 : vector<16x256xf32> to vector<16x256xbf16>
    %c15_i32 = arith.constant 15 : i32
    %22 = tpu.dynamic_rotate %9 by %c15_i32 dim 1 : vector<16x256xf32>, i32 -> vector<16x256xf32>
    %c2 = arith.constant 2 : index
    %c0_12 = arith.constant 0 : index
    %c0_13 = arith.constant 0 : index
    %23 = vector.load %arg10[%c2, %c0_12, %c0_13] : memref<9x1x256xf32, #tpu.memory_space<vmem>>, vector<1x1x256xf32>
    %24 = vector.shape_cast %23 : vector<1x1x256xf32> to vector<1x256xf32>
    %25 = vector.broadcast %24 : vector<1x256xf32> to vector<16x256xf32>
    %26 = arith.mulf %22, %25 : vector<16x256xf32>
    %27 = arith.truncf %26 : vector<16x256xf32> to vector<16x256xbf16>
    %c1_i32 = arith.constant 1 : i32
    %28 = tpu.dynamic_rotate %9 by %c1_i32 dim 1 : vector<16x256xf32>, i32 -> vector<16x256xf32>
    %c3 = arith.constant 3 : index
    %c0_14 = arith.constant 0 : index
    %c0_15 = arith.constant 0 : index
    %29 = vector.load %arg10[%c3, %c0_14, %c0_15] : memref<9x1x256xf32, #tpu.memory_space<vmem>>, vector<1x1x256xf32>
    %30 = vector.shape_cast %29 : vector<1x1x256xf32> to vector<1x256xf32>
    %31 = vector.broadcast %30 : vector<1x256xf32> to vector<16x256xf32>
    %32 = arith.mulf %28, %31 : vector<16x256xf32>
    %33 = arith.truncf %32 : vector<16x256xf32> to vector<16x256xbf16>
    %34 = arith.truncf %9 : vector<16x256xf32> to vector<16x256xbf16>
    %c255_i32 = arith.constant 255 : i32
    %35 = tpu.dynamic_rotate %9 by %c255_i32 dim 1 : vector<16x256xf32>, i32 -> vector<16x256xf32>
    %c5 = arith.constant 5 : index
    %c0_16 = arith.constant 0 : index
    %c0_17 = arith.constant 0 : index
    %36 = vector.load %arg10[%c5, %c0_16, %c0_17] : memref<9x1x256xf32, #tpu.memory_space<vmem>>, vector<1x1x256xf32>
    %37 = vector.shape_cast %36 : vector<1x1x256xf32> to vector<1x256xf32>
    %38 = vector.broadcast %37 : vector<1x256xf32> to vector<16x256xf32>
    %39 = arith.mulf %35, %38 : vector<16x256xf32>
    %40 = arith.truncf %39 : vector<16x256xf32> to vector<16x256xbf16>
    %c241_i32 = arith.constant 241 : i32
    %41 = tpu.dynamic_rotate %9 by %c241_i32 dim 1 : vector<16x256xf32>, i32 -> vector<16x256xf32>
    %c6 = arith.constant 6 : index
    %c0_18 = arith.constant 0 : index
    %c0_19 = arith.constant 0 : index
    %42 = vector.load %arg10[%c6, %c0_18, %c0_19] : memref<9x1x256xf32, #tpu.memory_space<vmem>>, vector<1x1x256xf32>
    %43 = vector.shape_cast %42 : vector<1x1x256xf32> to vector<1x256xf32>
    %44 = vector.broadcast %43 : vector<1x256xf32> to vector<16x256xf32>
    %45 = arith.mulf %41, %44 : vector<16x256xf32>
    %46 = arith.truncf %45 : vector<16x256xf32> to vector<16x256xbf16>
    %c240_i32 = arith.constant 240 : i32
    %47 = tpu.dynamic_rotate %9 by %c240_i32 dim 1 : vector<16x256xf32>, i32 -> vector<16x256xf32>
    %c7 = arith.constant 7 : index
    %c0_20 = arith.constant 0 : index
    %c0_21 = arith.constant 0 : index
    %48 = vector.load %arg10[%c7, %c0_20, %c0_21] : memref<9x1x256xf32, #tpu.memory_space<vmem>>, vector<1x1x256xf32>
    %49 = vector.shape_cast %48 : vector<1x1x256xf32> to vector<1x256xf32>
    %50 = vector.broadcast %49 : vector<1x256xf32> to vector<16x256xf32>
    %51 = arith.mulf %47, %50 : vector<16x256xf32>
    %52 = arith.truncf %51 : vector<16x256xf32> to vector<16x256xbf16>
    %c239_i32 = arith.constant 239 : i32
    %53 = tpu.dynamic_rotate %9 by %c239_i32 dim 1 : vector<16x256xf32>, i32 -> vector<16x256xf32>
    %c8 = arith.constant 8 : index
    %c0_22 = arith.constant 0 : index
    %c0_23 = arith.constant 0 : index
    %54 = vector.load %arg10[%c8, %c0_22, %c0_23] : memref<9x1x256xf32, #tpu.memory_space<vmem>>, vector<1x1x256xf32>
    %55 = vector.shape_cast %54 : vector<1x1x256xf32> to vector<1x256xf32>
    %56 = vector.broadcast %55 : vector<1x256xf32> to vector<16x256xf32>
    %57 = arith.mulf %53, %56 : vector<16x256xf32>
    %58 = arith.truncf %57 : vector<16x256xf32> to vector<16x256xbf16>
    %59 = tpu.concatenate %15, %21, %27, %33, %34, %40, %46, %52, %58 in 0 : vector<16x256xbf16>, vector<16x256xbf16>, vector<16x256xbf16>, vector<16x256xbf16>, vector<16x256xbf16>, vector<16x256xbf16>, vector<16x256xbf16>, vector<16x256xbf16>, vector<16x256xbf16> -> vector<144x256xbf16>
    %c0_24 = arith.constant 0 : index
    %c0_25 = arith.constant 0 : index
    %60 = vector.load %arg4[%c0_24, %c0_25] : memref<16x144xbf16, #tpu.memory_space<vmem>>, vector<16x144xbf16>
    %cst_26 = arith.constant dense<0.000000e+00> : vector<16x256xf32>
    %61 = tpu.matmul %60, %59, %cst_26 {dimension_numbers = #tpu.dot_dimension_numbers<[1], [0], [0], [1], [0, 0, 1, 1], [], []>} : vector<16x144xbf16>, vector<144x256xbf16>, vector<16x256xf32> -> vector<16x256xf32>
    %c0_27 = arith.constant 0 : index
    %c0_28 = arith.constant 0 : index
    %62 = vector.load %arg5[%c0_27, %c0_28] : memref<16x1xf32, #tpu.memory_space<vmem>>, vector<16x1xf32>
    %63 = vector.broadcast %62 : vector<16x1xf32> to vector<16x256xf32>
    %64 = arith.addf %61, %63 : vector<16x256xf32>
    %cst_29 = arith.constant 0.000000e+00 : f32
    %65 = vector.broadcast %cst_29 : f32 to vector<16x256xf32>
    %66 = arith.maximumf %64, %65 : vector<16x256xf32>
    %c0_30 = arith.constant 0 : index
    %c0_31 = arith.constant 0 : index
    %67 = vector.load %arg6[%c0_30, %c0_31] : memref<64x16xbf16, #tpu.memory_space<vmem>>, vector<64x16xbf16>
    %68 = arith.truncf %66 : vector<16x256xf32> to vector<16x256xbf16>
    %cst_32 = arith.constant dense<0.000000e+00> : vector<64x256xf32>
    %69 = tpu.matmul %67, %68, %cst_32 {dimension_numbers = #tpu.dot_dimension_numbers<[1], [0], [0], [1], [0, 0, 1, 1], [], []>} : vector<64x16xbf16>, vector<16x256xbf16>, vector<64x256xf32> -> vector<64x256xf32>
    %c0_33 = arith.constant 0 : index
    %c0_34 = arith.constant 0 : index
    %70 = vector.load %arg7[%c0_33, %c0_34] : memref<64x1xf32, #tpu.memory_space<vmem>>, vector<64x1xf32>
    %71 = vector.broadcast %70 : vector<64x1xf32> to vector<64x256xf32>
    %72 = arith.addf %69, %71 : vector<64x256xf32>
    %cst_35 = arith.constant dense<0.000000e+00> : vector<64xf32>
    %73 = vector.multi_reduction <add>, %72, %cst_35 [1] : vector<64x256xf32> to vector<64xf32>
    %74 = vector.shape_cast %73 : vector<64xf32> to vector<64x1xf32>
    %cst_36 = arith.constant 2.560000e+02 : f32
    %75 = vector.broadcast %cst_36 : f32 to vector<64x1xf32>
    %76 = arith.divf %74, %75 : vector<64x1xf32>
    %c0_37 = arith.constant 0 : index
    %c0_38 = arith.constant 0 : index
    %77 = vector.load %arg8[%c0_37, %c0_38] : memref<4x64xbf16, #tpu.memory_space<vmem>>, vector<4x64xbf16>
    %78 = arith.truncf %76 : vector<64x1xf32> to vector<64x1xbf16>
    %cst_39 = arith.constant dense<0.000000e+00> : vector<4x1xf32>
    %79 = tpu.matmul %77, %78, %cst_39 {dimension_numbers = #tpu.dot_dimension_numbers<[1], [0], [0], [1], [0, 0, 1, 1], [], []>} : vector<4x64xbf16>, vector<64x1xbf16>, vector<4x1xf32> -> vector<4x1xf32>
    %cst_40 = arith.constant 0.000000e+00 : f32
    %80 = vector.broadcast %cst_40 : f32 to vector<4x1xf32>
    %81 = arith.maximumf %79, %80 : vector<4x1xf32>
    %c0_41 = arith.constant 0 : index
    %c0_42 = arith.constant 0 : index
    %82 = vector.load %arg9[%c0_41, %c0_42] : memref<64x4xbf16, #tpu.memory_space<vmem>>, vector<64x4xbf16>
    %83 = arith.truncf %81 : vector<4x1xf32> to vector<4x1xbf16>
    %cst_43 = arith.constant dense<0.000000e+00> : vector<64x1xf32>
    %84 = tpu.matmul %82, %83, %cst_43 {dimension_numbers = #tpu.dot_dimension_numbers<[1], [0], [0], [1], [0, 0, 1, 1], [], []>} : vector<64x4xbf16>, vector<4x1xbf16>, vector<64x1xf32> -> vector<64x1xf32>
    %85 = arith.negf %84 : vector<64x1xf32>
    %86 = math.exp %85 : vector<64x1xf32>
    %cst_44 = arith.constant 1.000000e+00 : f32
    %87 = vector.broadcast %cst_44 : f32 to vector<64x1xf32>
    %88 = arith.addf %87, %86 : vector<64x1xf32>
    %89 = arith.divf %87, %88 : vector<64x1xf32>
    %90 = vector.broadcast %89 : vector<64x1xf32> to vector<64x256xf32>
    %91 = arith.mulf %72, %90 : vector<64x256xf32>
    %92 = arith.addf %91, %1 : vector<64x256xf32>
    %cst_45 = arith.constant 0.000000e+00 : f32
    %93 = vector.broadcast %cst_45 : f32 to vector<64x256xf32>
    %94 = arith.maximumf %92, %93 : vector<64x256xf32>
    %c0_46 = arith.constant 0 : index
    %c0_47 = arith.constant 0 : index
    %c0_48 = arith.constant 0 : index
    %95 = vector.load %arg11[%c0_46, %c0_47, %c0_48] : memref<1x64x256xf32, #tpu.memory_space<vmem>>, vector<1x64x256xf32>
    %96 = vector.shape_cast %95 : vector<1x64x256xf32> to vector<64x256xf32>
    %97 = vector.shape_cast %94 : vector<64x256xf32> to vector<1x64x256xf32>
    tpu.vector_store %arg11[%c0_46, %c0_47, %c0_48], %97 {strides = array<i32>} : memref<1x64x256xf32, #tpu.memory_space<vmem>>, vector<1x64x256xf32>,
    return
  }
  func.func @transform_0(%arg0: i32) -> (i32, i32, i32) {
    %c0_i32 = arith.constant 0 : i32
    %c0_i32_0 = arith.constant 0 : i32
    %c0_i32_1 = arith.constant 0 : i32
    return %arg0, %c0_i32, %c0_i32_0 : i32, i32, i32
  }
  func.func @transform_1(%arg0: i32) -> (i32, i32) {
    %c0_i32 = arith.constant 0 : i32
    %c0_i32_0 = arith.constant 0 : i32
    %c0_i32_1 = arith.constant 0 : i32
    return %c0_i32, %c0_i32_0 : i32, i32
  }
  func.func @transform_2(%arg0: i32) -> (i32, i32) {
    %c0_i32 = arith.constant 0 : i32
    %c0_i32_0 = arith.constant 0 : i32
    %c0_i32_1 = arith.constant 0 : i32
    return %c0_i32, %c0_i32_0 : i32, i32
  }
  func.func @transform_3(%arg0: i32) -> (i32, i32) {
    %c0_i32 = arith.constant 0 : i32
    %c0_i32_0 = arith.constant 0 : i32
    %c0_i32_1 = arith.constant 0 : i32
    return %c0_i32, %c0_i32_0 : i32, i32
  }
  func.func @transform_4(%arg0: i32) -> (i32, i32) {
    %c0_i32 = arith.constant 0 : i32
    %c0_i32_0 = arith.constant 0 : i32
    %c0_i32_1 = arith.constant 0 : i32
    return %c0_i32, %c0_i32_0 : i32, i32
  }
  func.func @transform_5(%arg0: i32) -> (i32, i32) {
    %c0_i32 = arith.constant 0 : i32
    %c0_i32_0 = arith.constant 0 : i32
    %c0_i32_1 = arith.constant 0 : i32
    return %c0_i32, %c0_i32_0 : i32, i32
  }
  func.func @transform_6(%arg0: i32) -> (i32, i32) {
    %c0_i32 = arith.constant 0 : i32
    %c0_i32_0 = arith.constant 0 : i32
    %c0_i32_1 = arith.constant 0 : i32
    return %c0_i32, %c0_i32_0 : i32, i32
  }
  func.func @transform_7(%arg0: i32) -> (i32, i32) {
    %c0_i32 = arith.constant 0 : i32
    %c0_i32_0 = arith.constant 0 : i32
    %c0_i32_1 = arith.constant 0 : i32
    return %c0_i32, %c0_i32_0 : i32, i32
  }
  func.func @transform_8(%arg0: i32) -> (i32, i32) {
    %c0_i32 = arith.constant 0 : i32
    %c0_i32_0 = arith.constant 0 : i32
    %c0_i32_1 = arith.constant 0 : i32
    return %c0_i32, %c0_i32_0 : i32, i32
  }
  func.func @transform_9(%arg0: i32) -> (i32, i32, i32) {
    %c0_i32 = arith.constant 0 : i32
    %c0_i32_0 = arith.constant 0 : i32
    %c0_i32_1 = arith.constant 0 : i32
    %c0_i32_2 = arith.constant 0 : i32
    return %c0_i32, %c0_i32_0, %c0_i32_1 : i32, i32, i32
  }
  func.func @transform_10(%arg0: i32) -> (i32, i32, i32) {
    %c0_i32 = arith.constant 0 : i32
    %c0_i32_0 = arith.constant 0 : i32
    %c0_i32_1 = arith.constant 0 : i32
    return %arg0, %c0_i32, %c0_i32_0 : i32, i32, i32
  }
}

</mosaic_0001>

<llo_original>
// kernel: se_bottleneck_forward.1
$region0: #{se_bottleneck_forward.1}
  #allocation0 [shape = 'u32[]', space=smem, size = 0x4, offset = 0x4, fixed_abs, tag = 'smem constant byte address 0x4 - core index']
  #allocation1 [shape = 'u32[72,128]{1,0:T(1,128)}', space=vmem, size = 0x9000, scoped, tag = 'internal scratch']
  %s0 = inlined_call_operand.vmem [shape: f32[2,64,256], index: 0, kind: input, shape index: {}]
  %s1 = inlined_call_operand.vmem [shape: bf16[16,64], index: 1, kind: input, shape index: {}]
  %s2 = inlined_call_operand.vmem [shape: f32[16,1], index: 2, kind: input, shape index: {}]
  %s3 = inlined_call_operand.vmem [shape: bf16[16,144], index: 3, kind: input, shape index: {}]
  %s4 = inlined_call_operand.vmem [shape: f32[16,1], index: 4, kind: input, shape index: {}]
  %s5 = inlined_call_operand.vmem [shape: bf16[64,16], index: 5, kind: input, shape index: {}]
  %s6 = inlined_call_operand.vmem [shape: f32[64,1], index: 6, kind: input, shape index: {}]
  %s7 = inlined_call_operand.vmem [shape: bf16[4,64], index: 7, kind: input, shape index: {}]
  %s8 = inlined_call_operand.vmem [shape: bf16[64,4], index: 8, kind: input, shape index: {}]
  %s9 = inlined_call_operand.vmem [shape: f32[9,1,256], index: 9, kind: input, shape index: {}]
  %s10 = inlined_call_operand.vmem [shape: f32[2,64,256], index: 10, kind: output, shape index: {}]
  %s11 = sld [smem:[#allocation0]]
  $region73: #{se_bottleneck_forward.1} parent=0
    _
  %s13 = ssub.s32 1, %s11
  %s14 = scalar_select 0, %s13, %s11
  loop: start=0, step=1, limit=4
  $region2: #{se_bottleneck_forward.1} parent=0 // loop_pre_header
    _
  $region3: #{se_bottleneck_forward.1} parent=0 // loop_header
    %s16 = sphi 0, %s20
    %p17 = scmp.ge.s32.totalorder %s16, 4
    %s26 = sphi 0, %s28
    %s29 = sphi 0, %s26
    %s30 = sphi 0, %s29
    %s46 = sphi 0, %s30
    %s50 = sphi 0, %s50
    %s52 = sphi 0, %s50
    %s53 = sphi 0, %s52
    %s67 = sphi 0, %s53
    %s71 = sphi 0, %s71
    %s73 = sphi 0, %s71
    %s74 = sphi 0, %s73
    %s88 = sphi 0, %s74
    %s92 = sphi 0, %s92
    %s94 = sphi 0, %s92
    %s95 = sphi 0, %s94
    %s109 = sphi 0, %s95
    %s113 = sphi 0, %s113
    %s115 = sphi 0, %s113
    %s116 = sphi 0, %s115
    %s130 = sphi 0, %s116
    %s134 = sphi 0, %s134
    %s136 = sphi 0, %s134
    %s137 = sphi 0, %s136
    %s151 = sphi 0, %s137
    %s155 = sphi 0, %s155
    %s157 = sphi 0, %s155
    %s158 = sphi 0, %s157
    %s172 = sphi 0, %s158
    %s176 = sphi 0, %s176
    %s178 = sphi 0, %s176
    %s179 = sphi 0, %s178
    %s193 = sphi 0, %s179
    %s197 = sphi 0, %s197
    %s199 = sphi 0, %s197
    %s200 = sphi 0, %s199
    %s214 = sphi 0, %s200
    %s218 = sphi 0, %s218
    %s220 = sphi 0, %s218
    %s221 = sphi 0, %s220
    %s235 = sphi 0, %s221
    %s241 = sphi 0, %s243
    %s244 = sphi 0, %s241
    %s245 = sphi 0, %s244
    %s261 = sphi 0, %s245
  $region4: #{se_bottleneck_forward.1} parent=0 // loop_header_branch
    %19 = sbr.rel (%p17) target = $region8
  $region5: #{se_bottleneck_forward.1} parent=0 // loop_body
    %s21 = ssub.s32 %s16, 1
    %s22 = ssub.s32 %s16, 2
    %s23 = sadd.s32 %s16, 1
    %s24 = ssub.s32 %s16, %s23
    %p25 = scmp.eq.s32.totalorder %s24, 0
    %s27 = sadd.s32 %s26, 1
    %s28 = scalar_select %p25, %s26, %s27
    %p31 = pneg %p25
    %p32 = scmp.eq.s32.totalorder %s16, 1
    %p33 = por %p31, %p32
    %p34 = scmp.ne.s32.totalorder %s26, %s29
    %p35 = scmp.eq.s32.totalorder %s16, 0
    %p36 = por %p34, %p35
    %p37 = scmp.ne.s32.totalorder %s26, %s29
    %p38 = scmp.eq.s32.totalorder %s21, 1
    %p39 = por %p37, %p38
    %p40 = scmp.ne.s32.totalorder %s29, %s30
    %p41 = scmp.eq.s32.totalorder %s21, 0
    %p42 = por %p40, %p41
    %p43 = scmp.ne.s32.totalorder %s29, %s30
    %p44 = scmp.eq.s32.totalorder %s22, 1
    %p45 = por %p43, %p44
    %p47 = scmp.ne.s32.totalorder %s30, %s46
    %p48 = scmp.eq.s32.totalorder %s22, 0
    %p49 = por %p47, %p48
    %s51 = sadd.s32 %s50, 1
    %p54 = scmp.eq.s32.totalorder %s16, 1
    %p55 = scmp.ne.s32.totalorder %s50, %s52
    %p56 = scmp.eq.s32.totalorder %s16, 0
    %p57 = por %p55, %p56
    %p58 = scmp.ne.s32.totalorder %s50, %s52
    %p59 = scmp.eq.s32.totalorder %s21, 1
    %p60 = por %p58, %p59
    %p61 = scmp.ne.s32.totalorder %s52, %s53
    %p62 = scmp.eq.s32.totalorder %s21, 0
    %p63 = por %p61, %p62
    %p64 = scmp.ne.s32.totalorder %s52, %s53
    %p65 = scmp.eq.s32.totalorder %s22, 1
    %p66 = por %p64, %p65
    %p68 = scmp.ne.s32.totalorder %s53, %s67
    %p69 = scmp.eq.s32.totalorder %s22, 0
    %p70 = por %p68, %p69
    %s72 = sadd.s32 %s71, 1
    %p75 = scmp.eq.s32.totalorder %s16, 1
    %p76 = scmp.ne.s32.totalorder %s71, %s73
    %p77 = scmp.eq.s32.totalorder %s16, 0
    %p78 = por %p76, %p77
    %p79 = scmp.ne.s32.totalorder %s71, %s73
    %p80 = scmp.eq.s32.totalorder %s21, 1
    %p81 = por %p79, %p80
    %p82 = scmp.ne.s32.totalorder %s73, %s74
    %p83 = scmp.eq.s32.totalorder %s21, 0
    %p84 = por %p82, %p83
    %p85 = scmp.ne.s32.totalorder %s73, %s74
    %p86 = scmp.eq.s32.totalorder %s22, 1
    %p87 = por %p85, %p86
    %p89 = scmp.ne.s32.totalorder %s74, %s88
    %p90 = scmp.eq.s32.totalorder %s22, 0
    %p91 = por %p89, %p90
    %s93 = sadd.s32 %s92, 1
    %p96 = scmp.eq.s32.totalorder %s16, 1
    %p97 = scmp.ne.s32.totalorder %s92, %s94
    %p98 = scmp.eq.s32.totalorder %s16, 0
    %p99 = por %p97, %p98
    %p100 = scmp.ne.s32.totalorder %s92, %s94
    %p101 = scmp.eq.s32.totalorder %s21, 1
    %p102 = por %p100, %p101
    %p103 = scmp.ne.s32.totalorder %s94, %s95
    %p104 = scmp.eq.s32.totalorder %s21, 0
    %p105 = por %p103, %p104
    %p106 = scmp.ne.s32.totalorder %s94, %s95
    %p107 = scmp.eq.s32.totalorder %s22, 1
    %p108 = por %p106, %p107
    %p110 = scmp.ne.s32.totalorder %s95, %s109
    %p111 = scmp.eq.s32.totalorder %s22, 0
    %p112 = por %p110, %p111
    %s114 = sadd.s32 %s113, 1
    %p117 = scmp.eq.s32.totalorder %s16, 1
    %p118 = scmp.ne.s32.totalorder %s113, %s115
    %p119 = scmp.eq.s32.totalorder %s16, 0
    %p120 = por %p118, %p119
    %p121 = scmp.ne.s32.totalorder %s113, %s115
    %p122 = scmp.eq.s32.totalorder %s21, 1
    %p123 = por %p121, %p122
    %p124 = scmp.ne.s32.totalorder %s115, %s116
    %p125 = scmp.eq.s32.totalorder %s21, 0
    %p126 = por %p124, %p125
    %p127 = scmp.ne.s32.totalorder %s115, %s116
    %p128 = scmp.eq.s32.totalorder %s22, 1
    %p129 = por %p127, %p128
    %p131 = scmp.ne.s32.totalorder %s116, %s130
    %p132 = scmp.eq.s32.totalorder %s22, 0
    %p133 = por %p131, %p132
    %s135 = sadd.s32 %s134, 1
    %p138 = scmp.eq.s32.totalorder %s16, 1
    %p139 = scmp.ne.s32.totalorder %s134, %s136
    %p140 = scmp.eq.s32.totalorder %s16, 0
    %p141 = por %p139, %p140
    %p142 = scmp.ne.s32.totalorder %s134, %s136
    %p143 = scmp.eq.s32.totalorder %s21, 1
    %p144 = por %p142, %p143
    %p145 = scmp.ne.s32.totalorder %s136, %s137
    %p146 = scmp.eq.s32.totalorder %s21, 0
    %p147 = por %p145, %p146
    %p148 = scmp.ne.s32.totalorder %s136, %s137
    %p149 = scmp.eq.s32.totalorder %s22, 1
    %p150 = por %p148, %p149
    %p152 = scmp.ne.s32.totalorder %s137, %s151
    %p153 = scmp.eq.s32.totalorder %s22, 0
    %p154 = por %p152, %p153
    %s156 = sadd.s32 %s155, 1
    %p159 = scmp.eq.s32.totalorder %s16, 1
    %p160 = scmp.ne.s32.totalorder %s155, %s157
    %p161 = scmp.eq.s32.totalorder %s16, 0
    %p162 = por %p160, %p161
    %p163 = scmp.ne.s32.totalorder %s155, %s157
    %p164 = scmp.eq.s32.totalorder %s21, 1
    %p165 = por %p163, %p164
    %p166 = scmp.ne.s32.totalorder %s157, %s158
    %p167 = scmp.eq.s32.totalorder %s21, 0
    %p168 = por %p166, %p167
    %p169 = scmp.ne.s32.totalorder %s157, %s158
    %p170 = scmp.eq.s32.totalorder %s22, 1
    %p171 = por %p169, %p170
    %p173 = scmp.ne.s32.totalorder %s158, %s172
    %p174 = scmp.eq.s32.totalorder %s22, 0
    %p175 = por %p173, %p174
    %s177 = sadd.s32 %s176, 1
    %p180 = scmp.eq.s32.totalorder %s16, 1
    %p181 = scmp.ne.s32.totalorder %s176, %s178
    %p182 = scmp.eq.s32.totalorder %s16, 0
    %p183 = por %p181, %p182
    %p184 = scmp.ne.s32.totalorder %s176, %s178
    %p185 = scmp.eq.s32.totalorder %s21, 1
    %p186 = por %p184, %p185
    %p187 = scmp.ne.s32.totalorder %s178, %s179
    %p188 = scmp.eq.s32.totalorder %s21, 0
    %p189 = por %p187, %p188
    %p190 = scmp.ne.s32.totalorder %s178, %s179
    %p191 = scmp.eq.s32.totalorder %s22, 1
    %p192 = por %p190, %p191
    %p194 = scmp.ne.s32.totalorder %s179, %s193
    %p195 = scmp.eq.s32.totalorder %s22, 0
    %p196 = por %p194, %p195
    %s198 = sadd.s32 %s197, 1
    %p201 = scmp.eq.s32.totalorder %s16, 1
    %p202 = scmp.ne.s32.totalorder %s197, %s199
    %p203 = scmp.eq.s32.totalorder %s16, 0
    %p204 = por %p202, %p203
    %p205 = scmp.ne.s32.totalorder %s197, %s199
    %p206 = scmp.eq.s32.totalorder %s21, 1
    %p207 = por %p205, %p206
    %p208 = scmp.ne.s32.totalorder %s199, %s200
    %p209 = scmp.eq.s32.totalorder %s21, 0
    %p210 = por %p208, %p209
    %p211 = scmp.ne.s32.totalorder %s199, %s200
    %p212 = scmp.eq.s32.totalorder %s22, 1
    %p213 = por %p211, %p212
    %p215 = scmp.ne.s32.totalorder %s200, %s214
    %p216 = scmp.eq.s32.totalorder %s22, 0
    %p217 = por %p215, %p216
    %s219 = sadd.s32 %s218, 1
    %p222 = scmp.eq.s32.totalorder %s16, 1
    %p223 = scmp.ne.s32.totalorder %s218, %s220
    %p224 = scmp.eq.s32.totalorder %s16, 0
    %p225 = por %p223, %p224
    %p226 = scmp.ne.s32.totalorder %s218, %s220
    %p227 = scmp.eq.s32.totalorder %s21, 1
    %p228 = por %p226, %p227
    %p229 = scmp.ne.s32.totalorder %s220, %s221
    %p230 = scmp.eq.s32.totalorder %s21, 0
    %p231 = por %p229, %p230
    %p232 = scmp.ne.s32.totalorder %s220, %s221
    %p233 = scmp.eq.s32.totalorder %s22, 1
    %p234 = por %p232, %p233
    %p236 = scmp.ne.s32.totalorder %s221, %s235
    %p237 = scmp.eq.s32.totalorder %s22, 0
    %p238 = por %p236, %p237
    %s239 = ssub.s32 %s16, %s23
    %p240 = scmp.eq.s32.totalorder %s239, 0
    %s242 = sadd.s32 %s241, 1
    %s243 = scalar_select %p240, %s241, %s242
    %p246 = pneg %p240
    %p247 = scmp.eq.s32.totalorder %s16, 1
    %p248 = por %p246, %p247
    %p249 = scmp.ne.s32.totalorder %s241, %s244
    %p250 = scmp.eq.s32.totalorder %s16, 0
    %p251 = por %p249, %p250
    %p252 = scmp.ne.s32.totalorder %s241, %s244
    %p253 = scmp.eq.s32.totalorder %s21, 1
    %p254 = por %p252, %p253
    %p255 = scmp.ne.s32.totalorder %s244, %s245
    %p256 = scmp.eq.s32.totalorder %s21, 0
    %p257 = por %p255, %p256
    %p258 = scmp.ne.s32.totalorder %s244, %s245
    %p259 = scmp.eq.s32.totalorder %s22, 1
    %p260 = por %p258, %p259
    %p262 = scmp.ne.s32.totalorder %s245, %s261
    %p263 = scmp.eq.s32.totalorder %s22, 0
    %p264 = por %p262, %p263
    %p265 = scmp.le.s32.totalorder 1, %s16
    %p266 = scmp.lt.s32.totalorder %s16, 3
    %p267 = pnand %p265, %p266
    %p268 = pneg %p267
    // Predicated region
    $region9: #{se_bottleneck_forward.1} parent=5 // pred_check
      _
    $region10: #{se_bottleneck_forward.1} parent=5 // pred_check_branch
      %270 = sbr.rel (%p267) target = $region12
    $region11: #{se_bottleneck_forward.1} parent=5 // pred_region
      %s271 = ssub.s32 %s16, 1
      // Predicated region
      $region13: #{se_bottleneck_forward.1} parent=11 // pred_check
        %p272 = pneg %p63
      $region14: #{se_bottleneck_forward.1} parent=11 // pred_check_branch
        %274 = sbr.rel (%p272) target = $region16
      $region15: #{se_bottleneck_forward.1} parent=11 // pred_region
        _
      $region16: #{se_bottleneck_forward.1} parent=11 // pred_fallthru
        _
      // Predicated region
      $region17: #{se_bottleneck_forward.1} parent=11 // pred_check
        %p275 = pneg %p84
      $region18: #{se_bottleneck_forward.1} parent=11 // pred_check_branch
        %277 = sbr.rel (%p275) target = $region20
      $region19: #{se_bottleneck_forward.1} parent=11 // pred_region
        _
      $region20: #{se_bottleneck_forward.1} parent=11 // pred_fallthru
        _
      // Predicated region
      $region21: #{se_bottleneck_forward.1} parent=11 // pred_check
        %p278 = pneg %p105
      $region22: #{se_bottleneck_forward.1} parent=11 // pred_check_branch
        %280 = sbr.rel (%p278) target = $region24
      $region23: #{se_bottleneck_forward.1} parent=11 // pred_region
        _
      $region24: #{se_bottleneck_forward.1} parent=11 // pred_fallthru
        _
      // Predicated region
      $region25: #{se_bottleneck_forward.1} parent=11 // pred_check
        %p281 = pneg %p126
      $region26: #{se_bottleneck_forward.1} parent=11 // pred_check_branch
        %283 = sbr.rel (%p281) target = $region28
      $region27: #{se_bottleneck_forward.1} parent=11 // pred_region
        _
      $region28: #{se_bottleneck_forward.1} parent=11 // pred_fallthru
        _
      // Predicated region
      $region29: #{se_bottleneck_forward.1} parent=11 // pred_check
        %p284 = pneg %p147
      $region30: #{se_bottleneck_forward.1} parent=11 // pred_check_branch
        %286 = sbr.rel (%p284) target = $region32
      $region31: #{se_bottleneck_forward.1} parent=11 // pred_region
        _
      $region32: #{se_bottleneck_forward.1} parent=11 // pred_fallthru
        _
      // Predicated region
      $region33: #{se_bottleneck_forward.1} parent=11 // pred_check
        %p287 = pneg %p168
      $region34: #{se_bottleneck_forward.1} parent=11 // pred_check_branch
        %289 = sbr.rel (%p287) target = $region36
      $region35: #{se_bottleneck_forward.1} parent=11 // pred_region
        _
      $region36: #{se_bottleneck_forward.1} parent=11 // pred_fallthru
        _
      // Predicated region
      $region37: #{se_bottleneck_forward.1} parent=11 // pred_check
        %p290 = pneg %p189
      $region38: #{se_bottleneck_forward.1} parent=11 // pred_check_branch
        %292 = sbr.rel (%p290) target = $region40
      $region39: #{se_bottleneck_forward.1} parent=11 // pred_region
        _
      $region40: #{se_bottleneck_forward.1} parent=11 // pred_fallthru
        _
      // Predicated region
      $region41: #{se_bottleneck_forward.1} parent=11 // pred_check
        %p293 = pneg %p210
      $region42: #{se_bottleneck_forward.1} parent=11 // pred_check_branch
        %295 = sbr.rel (%p293) target = $region44
      $region43: #{se_bottleneck_forward.1} parent=11 // pred_region
        _
      $region44: #{se_bottleneck_forward.1} parent=11 // pred_fallthru
        _
      // Predicated region
      $region45: #{se_bottleneck_forward.1} parent=11 // pred_check
        %p296 = pneg %p231
      $region46: #{se_bottleneck_forward.1} parent=11 // pred_check_branch
        %298 = sbr.rel (%p296) target = $region48
      $region47: #{se_bottleneck_forward.1} parent=11 // pred_region
        _
      $region48: #{se_bottleneck_forward.1} parent=11 // pred_fallthru
        _
    $region12: #{se_bottleneck_forward.1} parent=5 // pred_fallthru
      _
    %p299 = scmp.lt.s32.totalorder %s16, 2
    // Predicated region
    $region49: #{se_bottleneck_forward.1} parent=5 // pred_check
      %p300 = pneg %p299
    $region50: #{se_bottleneck_forward.1} parent=5 // pred_check_branch
      %302 = sbr.rel (%p300) target = $region52
    $region51: #{se_bottleneck_forward.1} parent=5 // pred_region
      // Predicated region
      $region53: #{se_bottleneck_forward.1} parent=51 // pred_check
        %p303 = pneg %p36
      $region54: #{se_bottleneck_forward.1} parent=51 // pred_check_branch
        %305 = sbr.rel (%p303) target = $region56
      $region55: #{se_bottleneck_forward.1} parent=51 // pred_region
        %p306 = scmp.lt.s32.totalorder %s16, 1
        %s307 = scalar_select %p306, %s16, 1
        %s308 = smul.addr %s307, 16
        %s309 = smul.addr %s308, 8
        %s310 = scalar_lea.vmem %s0, %s309
      $region56: #{se_bottleneck_forward.1} parent=51 // pred_fallthru
        _
    $region52: #{se_bottleneck_forward.1} parent=5 // pred_fallthru
      _
    %p311 = scmp.le.s32.totalorder 1, %s16
    %p312 = scmp.lt.s32.totalorder %s16, 3
    %p313 = pnand %p311, %p312
    %p314 = pneg %p313
    // Predicated region
    $region57: #{se_bottleneck_forward.1} parent=5 // pred_check
      _
    $region58: #{se_bottleneck_forward.1} parent=5 // pred_check_branch
      %316 = sbr.rel (%p313) target = $region60
    $region59: #{se_bottleneck_forward.1} parent=5 // pred_region
      %s317 = ssub.s32 %s16, 1
      %p318 = scmp.lt.s32.totalorder %s21, 1
      %s319 = scalar_select %p318, %s21, 1
      %s320 = smul.addr %s319, 16
      %s321 = smul.addr %s320, 8
      %s322 = scalar_lea.vmem %s0, %s321
      %p323 = pneg %p42
      %p324 = pneg %p39
      %p325 = pneg %p63
      %p326 = pneg %p60
      %p327 = pneg %p84
      %p328 = pneg %p81
      %p329 = pneg %p105
      %p330 = pneg %p102
      %p331 = pneg %p126
      %p332 = pneg %p123
      %p333 = pneg %p147
      %p334 = pneg %p144
      %p335 = pneg %p168
      %p336 = pneg %p165
      %p337 = pneg %p189
      %p338 = pneg %p186
      %p339 = pneg %p210
      %p340 = pneg %p207
      %p341 = pneg %p231
      %p342 = pneg %p228
      %p343 = pneg %p257
      %p344 = pneg %p254
      %p345 = scmp.lt.s32.totalorder %s21, 1
      %s346 = scalar_select %p345, %s21, 1
      %s347 = smul.addr %s346, 16
      %s348 = smul.addr %s347, 8
      %s349 = scalar_lea.vmem %s10, %s348
      %p350 = scmp.lt.s32.totalorder %s21, 1
      %s351 = scalar_select %p350, %s21, 1
      %s352 = smul.addr %s351, 16
      %s353 = smul.addr %s352, 8
      %s354 = scalar_lea.vmem %s0, %s353
      %p355 = scmp.lt.s32.totalorder %s21, 1
      %s356 = scalar_select %p355, %s21, 1
      %s357 = smul.addr %s356, 16
      %s358 = smul.addr %s357, 8
      %s359 = scalar_lea.vmem %s10, %s358
      %v361 = vld [vmem:[%s354] sm:$0xff]
      %v362 = vld [vmem:[%s354 + $0x8] sm:$0xff]
      %v363 = vld [vmem:[%s354 + $0x10] sm:$0xff]
      %v364 = vld [vmem:[%s354 + $0x18] sm:$0xff]
      %v365 = vld [vmem:[%s354 + $0x20] sm:$0xff]
      %v366 = vld [vmem:[%s354 + $0x28] sm:$0xff]
      %v367 = vld [vmem:[%s354 + $0x30] sm:$0xff]
      %v368 = vld [vmem:[%s354 + $0x38] sm:$0xff]
      %v369 = vld [vmem:[%s354 + $0x40] sm:$0xff]
      %v370 = vld [vmem:[%s354 + $0x48] sm:$0xff]
      %v371 = vld [vmem:[%s354 + $0x50] sm:$0xff]
      %v372 = vld [vmem:[%s354 + $0x58] sm:$0xff]
      %v373 = vld [vmem:[%s354 + $0x60] sm:$0xff]
      %v374 = vld [vmem:[%s354 + $0x68] sm:$0xff]
      %v375 = vld [vmem:[%s354 + $0x70] sm:$0xff]
      %v376 = vld [vmem:[%s354 + $0x78] sm:$0xff]
      %v377 = vld [vmem:[%s1] sm:$0xf]
      %v378 = vld [vmem:[%s1 + $0x4] sm:$0xf]
      %v379 = vpack.c.bf16 %v363, %v361
      %v380 = vpack.c.bf16 %v364, %v362
      %v381 = vpack.c.bf16 %v367, %v365
      %v382 = vpack.c.bf16 %v368, %v366
      %v383 = vpack.c.bf16 %v371, %v369
      %v384 = vpack.c.bf16 %v372, %v370
      %v385 = vpack.c.bf16 %v375, %v373
      %v386 = vpack.c.bf16 %v376, %v374
      %v387 = vld [vmem:[%s2] sm:$0xff]
      %v388 = vld [vmem:[%s2 + $0x8] sm:$0xff]
      %390 = vset.pattern.permute.xlu0 0
      %391 = vperm.xlu0 %390, %v387
      %v392 = vpop.permute.xlu0 %391
      %395 = vset.pattern.permute.xlu0 0
      %396 = vperm.xlu0 %395, %v388
      %v397 = vpop.permute.xlu0 %396
      %v401 = vunpack.c.l.b16 %v377
      %v402 = vunpack.c.l.b16 %v378
      %v403 = vpack.c.b16 %v402, %v401
      %vm404 = vcmask 523264
      %v406 = vsel %vm404, %v403, 0
      %408 = vmatpush.bf16.msra.mxu0 0
      %409 = vmatpush.bf16.msra.mxu0 0
      %410 = vmatpush.bf16.msra.mxu0 0
      %411 = vmatpush.bf16.msra.mxu0 0
      %412 = vmatpush.bf16.msra.mxu0 %v385
      %413 = vmatpush.bf16.msra.mxu0 %v383
      %414 = vmatpush.bf16.msra.mxu0 %v381
      %415 = vmatpush.bf16.msra.mxu0 %v379
      %416 = vmatmul.bf16.gmra.mxu0 %v406
      %v417 = vpop.f32.mrf.mxu0
      %v418 = vadd.f32 %v392, %v417
      %v419 = vpop.f32.mrf.mxu0
      %v420 = vadd.f32 %v397, %v419
      %421 = vdwg.mxu0
      %422 = vmatpush.bf16.msra.mxu0 0
      %423 = vmatpush.bf16.msra.mxu0 0
      %424 = vmatpush.bf16.msra.mxu0 0
      %425 = vmatpush.bf16.msra.mxu0 0
      %426 = vmatpush.bf16.msra.mxu0 %v386
      %427 = vmatpush.bf16.msra.mxu0 %v384
      %428 = vmatpush.bf16.msra.mxu0 %v382
      %429 = vmatpush.bf16.msra.mxu0 %v380
      %430 = vmatmul.bf16.gmra.mxu0 %v406
      %v431 = vpop.f32.mrf.mxu0
      %v432 = vadd.f32 %v392, %v431
      %v433 = vpop.f32.mrf.mxu0
      %v434 = vadd.f32 %v397, %v433
      %435 = vdwg.mxu0
      %v436 = vmax.f32 %v418, 0.0
      %v437 = vmax.f32 %v432, 0.0
      %v438 = vmax.f32 %v420, 0.0
      %v439 = vmax.f32 %v434, 0.0
      %440 = vrot.lane.b32.xlu0 %v436, 17
      %v441 = vpop.permute.xlu0 %440
      %442 = vrot.lane.b32.xlu0 %v438, 17
      %v443 = vpop.permute.xlu0 %442
      %444 = vrot.lane.b32.xlu0 %v437, 17
      %v445 = vpop.permute.xlu0 %444
      %446 = vrot.lane.b32.xlu0 %v439, 17
      %v447 = vpop.permute.xlu0 %446
      %v448 = vlaneseq
      %v449 = vand.u32 %v448, 127
      %vm450 = vcmp.lt.s32.totalorder %v449, 17
      %v451 = vsel %vm450, %v441, %v445
      %v452 = vsel %vm450, %v443, %v447
      %v453 = vsel %vm450, %v445, %v441
      %v454 = vsel %vm450, %v447, %v443
      %v455 = vld [vmem:[%s9] sm:$0x3]
      %v457 = vperm.slane %v455, 0
      %v458 = vperm.slane %v455, 1
      %v461 = vmul.f32 %v453, %v457
      %v462 = vmul.f32 %v451, %v458
      %v463 = vmul.f32 %v454, %v457
      %v464 = vmul.f32 %v452, %v458
      %v465 = vpack.c.bf16 %v462, %v461
      %v466 = vpack.c.bf16 %v464, %v463
      %467 = vrot.lane.b32.xlu0 %v436, 16
      %v468 = vpop.permute.xlu0 %467
      %469 = vrot.lane.b32.xlu0 %v438, 16
      %v470 = vpop.permute.xlu0 %469
      %471 = vrot.lane.b32.xlu0 %v437, 16
      %v472 = vpop.permute.xlu0 %471
      %473 = vrot.lane.b32.xlu0 %v439, 16
      %v474 = vpop.permute.xlu0 %473
      %vm475 = vcmp.lt.s32.totalorder %v449, 16
      %v476 = vsel %vm475, %v468, %v472
      %v477 = vsel %vm475, %v470, %v474
      %v478 = vsel %vm475, %v472, %v468
      %v479 = vsel %vm475, %v474, %v470
      %s480 = scalar_lea.vmem %s9, 2
      %v481 = vld [vmem:[%s480] sm:$0x3]
      %v483 = vperm.slane %v481, 0
      %v484 = vperm.slane %v481, 1
      %v487 = vmul.f32 %v478, %v483
      %v488 = vmul.f32 %v476, %v484
      %v489 = vmul.f32 %v479, %v483
      %v490 = vmul.f32 %v477, %v484
      %v491 = vpack.c.bf16 %v488, %v487
      %v492 = vpack.c.bf16 %v490, %v489
      %493 = vrot.lane.b32.xlu0 %v436, 15
      %v494 = vpop.permute.xlu0 %493
      %495 = vrot.lane.b32.xlu0 %v438, 15
      %v496 = vpop.permute.xlu0 %495
      %497 = vrot.lane.b32.xlu0 %v437, 15
      %v498 = vpop.permute.xlu0 %497
      %499 = vrot.lane.b32.xlu0 %v439, 15
      %v500 = vpop.permute.xlu0 %499
      %vm501 = vcmp.lt.s32.totalorder %v449, 15
      %v502 = vsel %vm501, %v494, %v498
      %v503 = vsel %vm501, %v496, %v500
      %v504 = vsel %vm501, %v498, %v494
      %v505 = vsel %vm501, %v500, %v496
      %s506 = scalar_lea.vmem %s9, 4
      %v507 = vld [vmem:[%s506] sm:$0x3]
      %v509 = vperm.slane %v507, 0
      %v510 = vperm.slane %v507, 1
      %v513 = vmul.f32 %v504, %v509
      %v514 = vmul.f32 %v502, %v510
      %v515 = vmul.f32 %v505, %v509
      %v516 = vmul.f32 %v503, %v510
      %v517 = vpack.c.bf16 %v514, %v513
      %v518 = vpack.c.bf16 %v516, %v515
      %519 = vrot.lane.b32.xlu0 %v436, 1
      %v520 = vpop.permute.xlu0 %519
      %521 = vrot.lane.b32.xlu0 %v438, 1
      %v522 = vpop.permute.xlu0 %521
      %523 = vrot.lane.b32.xlu0 %v437, 1
      %v524 = vpop.permute.xlu0 %523
      %525 = vrot.lane.b32.xlu0 %v439, 1
      %v526 = vpop.permute.xlu0 %525
      %vm527 = vcmp.lt.s32.totalorder %v449, 1
      %v528 = vsel %vm527, %v520, %v524
      %v529 = vsel %vm527, %v522, %v526
      %v530 = vsel %vm527, %v524, %v520
      %v531 = vsel %vm527, %v526, %v522
      %s532 = scalar_lea.vmem %s9, 6
      %v533 = vld [vmem:[%s532] sm:$0x3]
      %v535 = vperm.slane %v533, 0
      %v536 = vperm.slane %v533, 1
      %v539 = vmul.f32 %v530, %v535
      %v540 = vmul.f32 %v528, %v536
      %v541 = vmul.f32 %v531, %v535
      %v542 = vmul.f32 %v529, %v536
      %v543 = vpack.c.bf16 %v540, %v539
      %v544 = vpack.c.bf16 %v542, %v541
      %v545 = vpack.c.bf16 %v437, %v436
      %v546 = vpack.c.bf16 %v439, %v438
      %547 = vrot.lane.b32.xlu0 %v436, 127
      %v548 = vpop.permute.xlu0 %547
      %549 = vrot.lane.b32.xlu0 %v438, 127
      %v550 = vpop.permute.xlu0 %549
      %551 = vrot.lane.b32.xlu0 %v437, 127
      %v552 = vpop.permute.xlu0 %551
      %553 = vrot.lane.b32.xlu0 %v439, 127
      %v554 = vpop.permute.xlu0 %553
      %vm555 = vcmp.lt.s32.totalorder %v449, 127
      %v556 = vsel %vm555, %v548, %v552
      %v557 = vsel %vm555, %v550, %v554
      %v558 = vsel %vm555, %v552, %v548
      %v559 = vsel %vm555, %v554, %v550
      %s560 = scalar_lea.vmem %s9, 10
      %v561 = vld [vmem:[%s560] sm:$0x3]
      %v563 = vperm.slane %v561, 0
      %v564 = vperm.slane %v561, 1
      %v567 = vmul.f32 %v556, %v563
      %v568 = vmul.f32 %v558, %v564
      %v569 = vmul.f32 %v557, %v563
      %v570 = vmul.f32 %v559, %v564
      %v571 = vpack.c.bf16 %v568, %v567
      %v572 = vpack.c.bf16 %v570, %v569
      %573 = vrot.lane.b32.xlu0 %v436, 113
      %v574 = vpop.permute.xlu0 %573
      %575 = vrot.lane.b32.xlu0 %v438, 113
      %v576 = vpop.permute.xlu0 %575
      %577 = vrot.lane.b32.xlu0 %v437, 113
      %v578 = vpop.permute.xlu0 %577
      %579 = vrot.lane.b32.xlu0 %v439, 113
      %v580 = vpop.permute.xlu0 %579
      %vm581 = vcmp.lt.s32.totalorder %v449, 113
      %v582 = vsel %vm581, %v574, %v578
      %v583 = vsel %vm581, %v576, %v580
      %v584 = vsel %vm581, %v578, %v574
      %v585 = vsel %vm581, %v580, %v576
      %s586 = scalar_lea.vmem %s9, 12
      %v587 = vld [vmem:[%s586] sm:$0x3]
      %v589 = vperm.slane %v587, 0
      %v590 = vperm.slane %v587, 1
      %v593 = vmul.f32 %v582, %v589
      %v594 = vmul.f32 %v584, %v590
      %v595 = vmul.f32 %v583, %v589
      %v596 = vmul.f32 %v585, %v590
      %v597 = vpack.c.bf16 %v594, %v593
      %v598 = vpack.c.bf16 %v596, %v595
      %599 = vrot.lane.b32.xlu0 %v436, 112
      %v600 = vpop.permute.xlu0 %599
      %601 = vrot.lane.b32.xlu0 %v438, 112
      %v602 = vpop.permute.xlu0 %601
      %603 = vrot.lane.b32.xlu0 %v437, 112
      %v604 = vpop.permute.xlu0 %603
      %605 = vrot.lane.b32.xlu0 %v439, 112
      %v606 = vpop.permute.xlu0 %605
      %vm607 = vcmp.lt.s32.totalorder %v449, 112
      %v608 = vsel %vm607, %v600, %v604
      %v609 = vsel %vm607, %v602, %v606
      %v610 = vsel %vm607, %v604, %v600
      %v611 = vsel %vm607, %v606, %v602
      %s612 = scalar_lea.vmem %s9, 14
      %v613 = vld [vmem:[%s612] sm:$0x3]
      %v615 = vperm.slane %v613, 0
      %v616 = vperm.slane %v613, 1
      %v619 = vmul.f32 %v608, %v615
      %v620 = vmul.f32 %v610, %v616
      %v621 = vmul.f32 %v609, %v615
      %v622 = vmul.f32 %v611, %v616
      %v623 = vpack.c.bf16 %v620, %v619
      %v624 = vpack.c.bf16 %v622, %v621
      %625 = vrot.lane.b32.xlu0 %v436, 111
      %v626 = vpop.permute.xlu0 %625
      %627 = vrot.lane.b32.xlu0 %v438, 111
      %v628 = vpop.permute.xlu0 %627
      %629 = vrot.lane.b32.xlu0 %v437, 111
      %v630 = vpop.permute.xlu0 %629
      %631 = vrot.lane.b32.xlu0 %v439, 111
      %v632 = vpop.permute.xlu0 %631
      %vm633 = vcmp.lt.s32.totalorder %v449, 111
      %v634 = vsel %vm633, %v626, %v630
      %v635 = vsel %vm633, %v628, %v632
      %v636 = vsel %vm633, %v630, %v626
      %v637 = vsel %vm633, %v632, %v628
      %s638 = scalar_lea.vmem %s9, 16
      %v639 = vld [vmem:[%s638] sm:$0x3]
      %v641 = vperm.slane %v639, 0
      %v642 = vperm.slane %v639, 1
      %v645 = vmul.f32 %v634, %v641
      %v646 = vmul.f32 %v636, %v642
      %v647 = vmul.f32 %v635, %v641
      %v648 = vmul.f32 %v637, %v642
      %v649 = vpack.c.bf16 %v646, %v645
      %v650 = vpack.c.bf16 %v648, %v647
      %v653 = vunpack.c.l.b16 %v465
      %v654 = vunpack.c.h.b16 %v465
      %v655 = vunpack.c.l.b16 %v466
      %v656 = vunpack.c.h.b16 %v466
      %v657 = vpack.c.b16 %v655, %v653
      %v658 = vpack.c.b16 %v656, %v654
      %v663 = vunpack.c.l.b16 %v491
      %v664 = vunpack.c.h.b16 %v491
      %v665 = vunpack.c.l.b16 %v492
      %v666 = vunpack.c.h.b16 %v492
      %v667 = vpack.c.b16 %v665, %v663
      %v668 = vpack.c.b16 %v666, %v664
      %v673 = vunpack.c.l.b16 %v517
      %v674 = vunpack.c.h.b16 %v517
      %v675 = vunpack.c.l.b16 %v518
      %v676 = vunpack.c.h.b16 %v518
      %v677 = vpack.c.b16 %v675, %v673
      %v678 = vpack.c.b16 %v676, %v674
      %v683 = vunpack.c.l.b16 %v543
      %v684 = vunpack.c.h.b16 %v543
      %v685 = vunpack.c.l.b16 %v544
      %v686 = vunpack.c.h.b16 %v544
      %v687 = vpack.c.b16 %v685, %v683
      %v688 = vpack.c.b16 %v686, %v684
      %v693 = vunpack.c.l.b16 %v545
      %v694 = vunpack.c.h.b16 %v545
      %v695 = vunpack.c.l.b16 %v546
      %v696 = vunpack.c.h.b16 %v546
      %v697 = vpack.c.b16 %v695, %v693
      %v698 = vpack.c.b16 %v696, %v694
      %v703 = vunpack.c.l.b16 %v571
      %v704 = vunpack.c.h.b16 %v571
      %v705 = vunpack.c.l.b16 %v572
      %v706 = vunpack.c.h.b16 %v572
      %v707 = vpack.c.b16 %v705, %v703
      %v708 = vpack.c.b16 %v706, %v704
      %v713 = vunpack.c.l.b16 %v597
      %v714 = vunpack.c.h.b16 %v597
      %v715 = vunpack.c.l.b16 %v598
      %v716 = vunpack.c.h.b16 %v598
      %v717 = vpack.c.b16 %v715, %v713
      %v718 = vpack.c.b16 %v716, %v714
      %v723 = vunpack.c.l.b16 %v623
      %v724 = vunpack.c.h.b16 %v623
      %v725 = vunpack.c.l.b16 %v624
      %v726 = vunpack.c.h.b16 %v624
      %v727 = vpack.c.b16 %v725, %v723
      %v728 = vpack.c.b16 %v726, %v724
      %v733 = vunpack.c.l.b16 %v649
      %v734 = vunpack.c.h.b16 %v649
      %v735 = vunpack.c.l.b16 %v650
      %v736 = vunpack.c.h.b16 %v650
      %v737 = vpack.c.b16 %v735, %v733
      %v738 = vpack.c.b16 %v736, %v734
      %v741 = vld [vmem:[%s3] sm:$0xff]
      %v742 = vld [vmem:[%s3 + $0x8] sm:$0xff]
      %v743 = vld [vmem:[%s4] sm:$0xff]
      %v744 = vld [vmem:[%s4 + $0x8] sm:$0xff]
      %746 = vset.pattern.permute.xlu0 0
      %747 = vperm.xlu0 %746, %v743
      %v748 = vpop.permute.xlu0 %747
      %751 = vset.pattern.permute.xlu0 0
      %752 = vperm.xlu0 %751, %v744
      %v753 = vpop.permute.xlu0 %752
      %v757 = vunpack.c.l.b16 %v741
      %v758 = vunpack.c.h.b16 %v741
      %v759 = vunpack.c.l.b16 %v742
      %v760 = vunpack.c.h.b16 %v742
      %v761 = vpack.c.b16 %v759, %v757
      %v762 = vpack.c.b16 %v760, %v758
      %vm764 = vcmask 130048
      %v766 = vsel %vm764, %v762, 0
      %768 = vmatpush.bf16.msra.mxu0 %v727
      %769 = vmatpush.bf16.msra.mxu0 %v717
      %770 = vmatpush.bf16.msra.mxu0 %v707
      %771 = vmatpush.bf16.msra.mxu0 %v697
      %772 = vmatpush.bf16.msra.mxu0 %v687
      %773 = vmatpush.bf16.msra.mxu0 %v677
      %774 = vmatpush.bf16.msra.mxu0 %v667
      %775 = vmatpush.bf16.msra.mxu0 %v657
      %776 = vmatmul.bf16.gmra.mxu0 %v761
      %v777 = vpop.f32.mrf.mxu0
      %v778 = vadd.f32 %v748, %v777
      %v779 = vpop.f32.mrf.mxu0
      %v780 = vadd.f32 %v753, %v779
      %781 = vdwg.mxu0
      %782 = vmatpush.bf16.msra.mxu0 0
      %783 = vmatpush.bf16.msra.mxu0 0
      %784 = vmatpush.bf16.msra.mxu0 0
      %785 = vmatpush.bf16.msra.mxu0 0
      %786 = vmatpush.bf16.msra.mxu0 0
      %787 = vmatpush.bf16.msra.mxu0 0
      %788 = vmatpush.bf16.msra.mxu0 0
      %789 = vmatpush.bf16.msra.mxu0 %v737
      %790 = vmatmul.bf16.gmra.mxu0 %v766
      %v791 = vpop.f32.mrf.mxu0
      %v792 = vadd.f32 %v778, %v791
      %v793 = vpop.f32.mrf.mxu0
      %v794 = vadd.f32 %v780, %v793
      %795 = vdwg.mxu0
      %796 = vmatpush.bf16.msra.mxu0 %v728
      %797 = vmatpush.bf16.msra.mxu0 %v718
      %798 = vmatpush.bf16.msra.mxu0 %v708
      %799 = vmatpush.bf16.msra.mxu0 %v698
      %800 = vmatpush.bf16.msra.mxu0 %v688
      %801 = vmatpush.bf16.msra.mxu0 %v678
      %802 = vmatpush.bf16.msra.mxu0 %v668
      %803 = vmatpush.bf16.msra.mxu0 %v658
      %804 = vmatmul.bf16.gmra.mxu0 %v761
      %v805 = vpop.f32.mrf.mxu0
      %v806 = vadd.f32 %v748, %v805
      %v807 = vpop.f32.mrf.mxu0
      %v808 = vadd.f32 %v753, %v807
      %809 = vdwg.mxu0
      %810 = vmatpush.bf16.msra.mxu0 0
      %811 = vmatpush.bf16.msra.mxu0 0
      %812 = vmatpush.bf16.msra.mxu0 0
      %813 = vmatpush.bf16.msra.mxu0 0
      %814 = vmatpush.bf16.msra.mxu0 0
      %815 = vmatpush.bf16.msra.mxu0 0
      %816 = vmatpush.bf16.msra.mxu0 0
      %817 = vmatpush.bf16.msra.mxu0 %v738
      %818 = vmatmul.bf16.gmra.mxu0 %v766
      %v819 = vpop.f32.mrf.mxu0
      %v820 = vadd.f32 %v806, %v819
      %v821 = vpop.f32.mrf.mxu0
      %v822 = vadd.f32 %v808, %v821
      %823 = vdwg.mxu0
      %v824 = vmax.f32 %v792, 0.0
      %v825 = vmax.f32 %v820, 0.0
      %v826 = vmax.f32 %v794, 0.0
      %v827 = vmax.f32 %v822, 0.0
      %v828 = vld [vmem:[%s5] sm:$0xf]
      %v829 = vld [vmem:[%s5 + $0x4] sm:$0xf]
      %v830 = vld [vmem:[%s5 + $0x8] sm:$0xf]
      %v831 = vld [vmem:[%s5 + $0xc] sm:$0xf]
      %v832 = vld [vmem:[%s5 + $0x10] sm:$0xf]
      %v833 = vld [vmem:[%s5 + $0x14] sm:$0xf]
      %v834 = vld [vmem:[%s5 + $0x18] sm:$0xf]
      %v835 = vld [vmem:[%s5 + $0x1c] sm:$0xf]
      %v836 = vpack.c.bf16 %v826, %v824
      %v837 = vpack.c.bf16 %v827, %v825
      %v838 = vld [vmem:[%s6] sm:$0xff]
      %v839 = vld [vmem:[%s6 + $0x8] sm:$0xff]
      %v840 = vld [vmem:[%s6 + $0x10] sm:$0xff]
      %v841 = vld [vmem:[%s6 + $0x18] sm:$0xff]
      %v842 = vld [vmem:[%s6 + $0x20] sm:$0xff]
      %v843 = vld [vmem:[%s6 + $0x28] sm:$0xff]
      %v844 = vld [vmem:[%s6 + $0x30] sm:$0xff]
      %v845 = vld [vmem:[%s6 + $0x38] sm:$0xff]
      %847 = vset.pattern.permute.xlu0 0
      %848 = vperm.xlu0 %847, %v838
      %v849 = vpop.permute.xlu0 %848
      %852 = vset.pattern.permute.xlu0 0
      %853 = vperm.xlu0 %852, %v839
      %v854 = vpop.permute.xlu0 %853
      %857 = vset.pattern.permute.xlu0 0
      %858 = vperm.xlu0 %857, %v840
      %v859 = vpop.permute.xlu0 %858
      %862 = vset.pattern.permute.xlu0 0
      %863 = vperm.xlu0 %862, %v841
      %v864 = vpop.permute.xlu0 %863
      %867 = vset.pattern.permute.xlu0 0
      %868 = vperm.xlu0 %867, %v842
      %v869 = vpop.permute.xlu0 %868
      %872 = vset.pattern.permute.xlu0 0
      %873 = vperm.xlu0 %872, %v843
      %v874 = vpop.permute.xlu0 %873
      %877 = vset.pattern.permute.xlu0 0
      %878 = vperm.xlu0 %877, %v844
      %v879 = vpop.permute.xlu0 %878
      %882 = vset.pattern.permute.xlu0 0
      %883 = vperm.xlu0 %882, %v845
      %v884 = vpop.permute.xlu0 %883
      %v894 = vunpack.c.l.b16 %v828
      %v895 = vunpack.c.l.b16 %v829
      %v896 = vunpack.c.l.b16 %v830
      %v897 = vunpack.c.l.b16 %v831
      %v898 = vunpack.c.l.b16 %v832
      %v899 = vunpack.c.l.b16 %v833
      %v900 = vunpack.c.l.b16 %v834
      %v901 = vunpack.c.l.b16 %v835
      %v902 = vpack.c.b16 %v895, %v894
      %v903 = vpack.c.b16 %v897, %v896
      %v904 = vpack.c.b16 %v899, %v898
      %v905 = vpack.c.b16 %v901, %v900
      %v907 = vsel %vm764, %v902, 0
      %v910 = vsel %vm764, %v903, 0
      %v913 = vsel %vm764, %v904, 0
      %v916 = vsel %vm764, %v905, 0
      %918 = vmatpush.bf16.msra.mxu0 0
      %919 = vmatpush.bf16.msra.mxu0 0
      %920 = vmatpush.bf16.msra.mxu0 0
      %921 = vmatpush.bf16.msra.mxu0 0
      %922 = vmatpush.bf16.msra.mxu0 0
      %923 = vmatpush.bf16.msra.mxu0 0
      %924 = vmatpush.bf16.msra.mxu0 0
      %925 = vmatpush.bf16.msra.mxu0 %v836
      %926 = vmatmul.bf16.gmra.mxu0 %v907
      %v927 = vpop.f32.mrf.mxu0
      %v928 = vadd.f32 %v849, %v927
      %v929 = vpop.f32.mrf.mxu0
      %v930 = vadd.f32 %v854, %v929
      %931 = vmatmul.bf16.gmra.mxu0 %v910
      %v932 = vpop.f32.mrf.mxu0
      %v933 = vadd.f32 %v859, %v932
      %v934 = vpop.f32.mrf.mxu0
      %v935 = vadd.f32 %v864, %v934
      %936 = vmatmul.bf16.gmra.mxu0 %v913
      %v937 = vpop.f32.mrf.mxu0
      %v938 = vadd.f32 %v869, %v937
      %v939 = vpop.f32.mrf.mxu0
      %v940 = vadd.f32 %v874, %v939
      %941 = vmatmul.bf16.gmra.mxu0 %v916
      %v942 = vpop.f32.mrf.mxu0
      %v943 = vadd.f32 %v879, %v942
      %v944 = vpop.f32.mrf.mxu0
      %v945 = vadd.f32 %v884, %v944
      %946 = vdwg.mxu0
      %947 = vmatpush.bf16.msra.mxu0 0
      %948 = vmatpush.bf16.msra.mxu0 0
      %949 = vmatpush.bf16.msra.mxu0 0
      %950 = vmatpush.bf16.msra.mxu0 0
      %951 = vmatpush.bf16.msra.mxu0 0
      %952 = vmatpush.bf16.msra.mxu0 0
      %953 = vmatpush.bf16.msra.mxu0 0
      %954 = vmatpush.bf16.msra.mxu0 %v837
      %955 = vmatmul.bf16.gmra.mxu0 %v907
      %v956 = vpop.f32.mrf.mxu0
      %v957 = vadd.f32 %v849, %v956
      %v958 = vpop.f32.mrf.mxu0
      %v959 = vadd.f32 %v854, %v958
      %960 = vmatmul.bf16.gmra.mxu0 %v910
      %v961 = vpop.f32.mrf.mxu0
      %v962 = vadd.f32 %v859, %v961
      %v963 = vpop.f32.mrf.mxu0
      %v964 = vadd.f32 %v864, %v963
      %965 = vmatmul.bf16.gmra.mxu0 %v913
      %v966 = vpop.f32.mrf.mxu0
      %v967 = vadd.f32 %v869, %v966
      %v968 = vpop.f32.mrf.mxu0
      %v969 = vadd.f32 %v874, %v968
      %970 = vmatmul.bf16.gmra.mxu0 %v916
      %v971 = vpop.f32.mrf.mxu0
      %v972 = vadd.f32 %v879, %v971
      %v973 = vpop.f32.mrf.mxu0
      %v974 = vadd.f32 %v884, %v973
      %975 = vdwg.mxu0
      %v976 = vadd.f32 %v928, %v957
      %977 = vadd.xlane.f32.xlu0 %v976
      %v978 = vpop.xlane.xlu0 %977
      %v979 = vadd.f32 %v930, %v959
      %980 = vadd.xlane.f32.xlu0 %v979
      %v981 = vpop.xlane.xlu0 %980
      %v982 = vadd.f32 %v933, %v962
      %983 = vadd.xlane.f32.xlu0 %v982
      %v984 = vpop.xlane.xlu0 %983
      %v985 = vadd.f32 %v935, %v964
      %986 = vadd.xlane.f32.xlu0 %v985
      %v987 = vpop.xlane.xlu0 %986
      %v988 = vadd.f32 %v938, %v967
      %989 = vadd.xlane.f32.xlu0 %v988
      %v990 = vpop.xlane.xlu0 %989
      %v991 = vadd.f32 %v940, %v969
      %992 = vadd.xlane.f32.xlu0 %v991
      %v993 = vpop.xlane.xlu0 %992
      %v994 = vadd.f32 %v943, %v972
      %995 = vadd.xlane.f32.xlu0 %v994
      %v996 = vpop.xlane.xlu0 %995
      %v997 = vadd.f32 %v945, %v974
      %998 = vadd.xlane.f32.xlu0 %v997
      %v999 = vpop.xlane.xlu0 %998
      %v1000 = vrcp.pop 256.0
      %v1001 = vmul.f32 256.0, %v1000
      %v1002 = vsub.f32 1.0, %v1001
      %v1003 = vmul.f32 %v1000, %v1002
      %v1004 = vadd.f32 %v1000, %v1003
      %vm1005 = vweird.f32 %v1000
      %v1006 = vsel %vm1005, %v1000, %v1004
      %v1007 = vmul.f32 %v978, %v1006
      %v1008 = vmul.f32 %v981, %v1006
      %v1009 = vmul.f32 %v984, %v1006
      %v1010 = vmul.f32 %v987, %v1006
      %v1011 = vmul.f32 %v990, %v1006
      %v1012 = vmul.f32 %v993, %v1006
      %v1013 = vmul.f32 %v996, %v1006
      %v1014 = vmul.f32 %v999, %v1006
      %v1015 = vld [vmem:[%s7] sm:$0x3]
      %v1016 = vpack.c.bf16 %v1008, %v1007
      %v1017 = vpack.c.bf16 %v1010, %v1009
      %v1018 = vpack.c.bf16 %v1012, %v1011
      %v1019 = vpack.c.bf16 %v1014, %v1013
      %v1021 = vsel %vm404, %v1015, 0
      %1023 = vmatpush.bf16.msra.mxu0 0
      %1024 = vmatpush.bf16.msra.mxu0 0
      %1025 = vmatpush.bf16.msra.mxu0 0
      %1026 = vmatpush.bf16.msra.mxu0 0
      %1027 = vmatpush.bf16.msra.mxu0 %v1019
      %1028 = vmatpush.bf16.msra.mxu0 %v1018
      %1029 = vmatpush.bf16.msra.mxu0 %v1017
      %1030 = vmatpush.bf16.msra.mxu0 %v1016
      %1031 = vmatmul.bf16.gmra.mxu0 %v1021
      %v1032 = vpop.f32.mrf.mxu0
      %v1033 = vadd.f32 0.0, %v1032
      %v1034 = vpop.f32.mrf.mxu0
      %1035 = vdwg.mxu0
      %v1036 = vmax.f32 %v1033, 0.0
      %v1037 = vld [vmem:[%s8] sm:$0xf]
      %v1038 = vld [vmem:[%s8 + $0x4] sm:$0xf]
      %v1039 = vld [vmem:[%s8 + $0x8] sm:$0xf]
      %v1040 = vld [vmem:[%s8 + $0xc] sm:$0xf]
      %v1041 = vld [vmem:[%s8 + $0x10] sm:$0xf]
      %v1042 = vld [vmem:[%s8 + $0x14] sm:$0xf]
      %v1043 = vld [vmem:[%s8 + $0x18] sm:$0xf]
      %v1044 = vld [vmem:[%s8 + $0x1c] sm:$0xf]
      %v1045 = vpack.c.bf16 %v1036, %v1036
      %v1054 = vunpack.c.l.b16 %v1037
      %v1055 = vunpack.c.l.b16 %v1038
      %v1056 = vunpack.c.l.b16 %v1039
      %v1057 = vunpack.c.l.b16 %v1040
      %v1058 = vunpack.c.l.b16 %v1041
      %v1059 = vunpack.c.l.b16 %v1042
      %v1060 = vunpack.c.l.b16 %v1043
      %v1061 = vunpack.c.l.b16 %v1044
      %v1062 = vpack.c.b16 %v1055, %v1054
      %v1063 = vpack.c.b16 %v1057, %v1056
      %v1064 = vpack.c.b16 %v1059, %v1058
      %v1065 = vpack.c.b16 %v1061, %v1060
      %vm1066 = vcmask 31744
      %v1068 = vsel %vm1066, %v1062, 0
      %v1071 = vsel %vm1066, %v1063, 0
      %v1074 = vsel %vm1066, %v1064, 0
      %v1077 = vsel %vm1066, %v1065, 0
      %vm1079 = vcmask 1041408
      %v1081 = vsel %vm1079, %v1045, 0
      %1083 = vmatpush.bf16.msra.mxu0 0
      %1084 = vmatpush.bf16.msra.mxu0 0
      %1085 = vmatpush.bf16.msra.mxu0 0
      %1086 = vmatpush.bf16.msra.mxu0 0
      %1087 = vmatpush.bf16.msra.mxu0 0
      %1088 = vmatpush.bf16.msra.mxu0 0
      %1089 = vmatpush.bf16.msra.mxu0 0
      %1090 = vmatpush.bf16.msra.mxu0 %v1081
      %1091 = vmatmul.bf16.gmra.mxu0 %v1068
      %v1092 = vpop.f32.mrf.mxu0
      %v1093 = vadd.f32 0.0, %v1092
      %v1094 = vpop.f32.mrf.mxu0
      %v1095 = vadd.f32 0.0, %v1094
      %1096 = vmatmul.bf16.gmra.mxu0 %v1071
      %v1097 = vpop.f32.mrf.mxu0
      %v1098 = vadd.f32 0.0, %v1097
      %v1099 = vpop.f32.mrf.mxu0
      %v1100 = vadd.f32 0.0, %v1099
      %1101 = vmatmul.bf16.gmra.mxu0 %v1074
      %v1102 = vpop.f32.mrf.mxu0
      %v1103 = vadd.f32 0.0, %v1102
      %v1104 = vpop.f32.mrf.mxu0
      %v1105 = vadd.f32 0.0, %v1104
      %1106 = vmatmul.bf16.gmra.mxu0 %v1077
      %v1107 = vpop.f32.mrf.mxu0
      %v1108 = vadd.f32 0.0, %v1107
      %v1109 = vpop.f32.mrf.mxu0
      %v1110 = vadd.f32 0.0, %v1109
      %1111 = vdwg.mxu0
      %v1112 = vxor.u32 %v1093, 2147483648
      %v1113 = vxor.u32 %v1095, 2147483648
      %v1114 = vxor.u32 %v1098, 2147483648
      %v1115 = vxor.u32 %v1100, 2147483648
      %v1116 = vxor.u32 %v1103, 2147483648
      %v1117 = vxor.u32 %v1105, 2147483648
      %v1118 = vxor.u32 %v1108, 2147483648
      %v1119 = vxor.u32 %v1110, 2147483648
      %v1120 = vmul.f32 %v1112, 1.442695
      %v1121 = vpow.pop %v1120
      %v1122 = vmul.f32 %v1113, 1.442695
      %v1123 = vpow.pop %v1122
      %v1124 = vmul.f32 %v1114, 1.442695
      %v1125 = vpow.pop %v1124
      %v1126 = vmul.f32 %v1115, 1.442695
      %v1127 = vpow.pop %v1126
      %v1128 = vmul.f32 %v1116, 1.442695
      %v1129 = vpow.pop %v1128
      %v1130 = vmul.f32 %v1117, 1.442695
      %v1131 = vpow.pop %v1130
      %v1132 = vmul.f32 %v1118, 1.442695
      %v1133 = vpow.pop %v1132
      %v1134 = vmul.f32 %v1119, 1.442695
      %v1135 = vpow.pop %v1134
      %v1136 = vadd.f32 %v1121, 1.0
      %v1137 = vadd.f32 %v1123, 1.0
      %v1138 = vadd.f32 %v1125, 1.0
      %v1139 = vadd.f32 %v1127, 1.0
      %v1140 = vadd.f32 %v1129, 1.0
      %v1141 = vadd.f32 %v1131, 1.0
      %v1142 = vadd.f32 %v1133, 1.0
      %v1143 = vadd.f32 %v1135, 1.0
      %v1144 = vrcp.pop %v1136
      %v1145 = vmul.f32 %v1136, %v1144
      %v1146 = vsub.f32 1.0, %v1145
      %v1147 = vmul.f32 %v1144, %v1146
      %v1148 = vadd.f32 %v1144, %v1147
      %vm1149 = vweird.f32 %v1136
      %vm1150 = vweird.f32 %v1144
      %vm1151 = vmor %vm1149, %vm1150
      %v1152 = vsel %vm1151, %v1144, %v1148
      %v1153 = vand.u32 2147483647, %v1136
      %vm1154 = vcmp.eq.f32.partialorder %v1153, 8.507059e+37
      %v1155 = vand.u32 %v1136, 2147483648
      %v1156 = vor.u32 1.1754944e-38, %v1155
      %v1157 = vsel %vm1154, %v1156, %v1152
      %v1158 = vmul.f32 1.0, %v1157
      %v1159 = vrcp.pop %v1137
      %v1160 = vmul.f32 %v1137, %v1159
      %v1161 = vsub.f32 1.0, %v1160
      %v1162 = vmul.f32 %v1159, %v1161
      %v1163 = vadd.f32 %v1159, %v1162
      %vm1164 = vweird.f32 %v1137
      %vm1165 = vweird.f32 %v1159
      %vm1166 = vmor %vm1164, %vm1165
      %v1167 = vsel %vm1166, %v1159, %v1163
      %v1168 = vand.u32 2147483647, %v1137
      %vm1169 = vcmp.eq.f32.partialorder %v1168, 8.507059e+37
      %v1170 = vand.u32 %v1137, 2147483648
      %v1171 = vor.u32 1.1754944e-38, %v1170
      %v1172 = vsel %vm1169, %v1171, %v1167
      %v1173 = vmul.f32 1.0, %v1172
      %v1174 = vrcp.pop %v1138
      %v1175 = vmul.f32 %v1138, %v1174
      %v1176 = vsub.f32 1.0, %v1175
      %v1177 = vmul.f32 %v1174, %v1176
      %v1178 = vadd.f32 %v1174, %v1177
      %vm1179 = vweird.f32 %v1138
      %vm1180 = vweird.f32 %v1174
      %vm1181 = vmor %vm1179, %vm1180
      %v1182 = vsel %vm1181, %v1174, %v1178
      %v1183 = vand.u32 2147483647, %v1138
      %vm1184 = vcmp.eq.f32.partialorder %v1183, 8.507059e+37
      %v1185 = vand.u32 %v1138, 2147483648
      %v1186 = vor.u32 1.1754944e-38, %v1185
      %v1187 = vsel %vm1184, %v1186, %v1182
      %v1188 = vmul.f32 1.0, %v1187
      %v1189 = vrcp.pop %v1139
      %v1190 = vmul.f32 %v1139, %v1189
      %v1191 = vsub.f32 1.0, %v1190
      %v1192 = vmul.f32 %v1189, %v1191
      %v1193 = vadd.f32 %v1189, %v1192
      %vm1194 = vweird.f32 %v1139
      %vm1195 = vweird.f32 %v1189
      %vm1196 = vmor %vm1194, %vm1195
      %v1197 = vsel %vm1196, %v1189, %v1193
      %v1198 = vand.u32 2147483647, %v1139
      %vm1199 = vcmp.eq.f32.partialorder %v1198, 8.507059e+37
      %v1200 = vand.u32 %v1139, 2147483648
      %v1201 = vor.u32 1.1754944e-38, %v1200
      %v1202 = vsel %vm1199, %v1201, %v1197
      %v1203 = vmul.f32 1.0, %v1202
      %v1204 = vrcp.pop %v1140
      %v1205 = vmul.f32 %v1140, %v1204
      %v1206 = vsub.f32 1.0, %v1205
      %v1207 = vmul.f32 %v1204, %v1206
      %v1208 = vadd.f32 %v1204, %v1207
      %vm1209 = vweird.f32 %v1140
      %vm1210 = vweird.f32 %v1204
      %vm1211 = vmor %vm1209, %vm1210
      %v1212 = vsel %vm1211, %v1204, %v1208
      %v1213 = vand.u32 2147483647, %v1140
      %vm1214 = vcmp.eq.f32.partialorder %v1213, 8.507059e+37
      %v1215 = vand.u32 %v1140, 2147483648
      %v1216 = vor.u32 1.1754944e-38, %v1215
      %v1217 = vsel %vm1214, %v1216, %v1212
      %v1218 = vmul.f32 1.0, %v1217
      %v1219 = vrcp.pop %v1141
      %v1220 = vmul.f32 %v1141, %v1219
      %v1221 = vsub.f32 1.0, %v1220
      %v1222 = vmul.f32 %v1219, %v1221
      %v1223 = vadd.f32 %v1219, %v1222
      %vm1224 = vweird.f32 %v1141
      %vm1225 = vweird.f32 %v1219
      %vm1226 = vmor %vm1224, %vm1225
      %v1227 = vsel %vm1226, %v1219, %v1223
      %v1228 = vand.u32 2147483647, %v1141
      %vm1229 = vcmp.eq.f32.partialorder %v1228, 8.507059e+37
      %v1230 = vand.u32 %v1141, 2147483648
      %v1231 = vor.u32 1.1754944e-38, %v1230
      %v1232 = vsel %vm1229, %v1231, %v1227
      %v1233 = vmul.f32 1.0, %v1232
      %v1234 = vrcp.pop %v1142
      %v1235 = vmul.f32 %v1142, %v1234
      %v1236 = vsub.f32 1.0, %v1235
      %v1237 = vmul.f32 %v1234, %v1236
      %v1238 = vadd.f32 %v1234, %v1237
      %vm1239 = vweird.f32 %v1142
      %vm1240 = vweird.f32 %v1234
      %vm1241 = vmor %vm1239, %vm1240
      %v1242 = vsel %vm1241, %v1234, %v1238
      %v1243 = vand.u32 2147483647, %v1142
      %vm1244 = vcmp.eq.f32.partialorder %v1243, 8.507059e+37
      %v1245 = vand.u32 %v1142, 2147483648
      %v1246 = vor.u32 1.1754944e-38, %v1245
      %v1247 = vsel %vm1244, %v1246, %v1242
      %v1248 = vmul.f32 1.0, %v1247
      %v1249 = vrcp.pop %v1143
      %v1250 = vmul.f32 %v1143, %v1249
      %v1251 = vsub.f32 1.0, %v1250
      %v1252 = vmul.f32 %v1249, %v1251
      %v1253 = vadd.f32 %v1249, %v1252
      %vm1254 = vweird.f32 %v1143
      %vm1255 = vweird.f32 %v1249
      %vm1256 = vmor %vm1254, %vm1255
      %v1257 = vsel %vm1256, %v1249, %v1253
      %v1258 = vand.u32 2147483647, %v1143
      %vm1259 = vcmp.eq.f32.partialorder %v1258, 8.507059e+37
      %v1260 = vand.u32 %v1143, 2147483648
      %v1261 = vor.u32 1.1754944e-38, %v1260
      %v1262 = vsel %vm1259, %v1261, %v1257
      %v1263 = vmul.f32 1.0, %v1262
      %1265 = vset.pattern.permute.xlu0 0
      %1266 = vperm.xlu0 %1265, %v1158
      %v1267 = vpop.permute.xlu0 %1266
      %1270 = vset.pattern.permute.xlu0 0
      %1271 = vperm.xlu0 %1270, %v1173
      %v1272 = vpop.permute.xlu0 %1271
      %1275 = vset.pattern.permute.xlu0 0
      %1276 = vperm.xlu0 %1275, %v1188
      %v1277 = vpop.permute.xlu0 %1276
      %1280 = vset.pattern.permute.xlu0 0
      %1281 = vperm.xlu0 %1280, %v1203
      %v1282 = vpop.permute.xlu0 %1281
      %1285 = vset.pattern.permute.xlu0 0
      %1286 = vperm.xlu0 %1285, %v1218
      %v1287 = vpop.permute.xlu0 %1286
      %1290 = vset.pattern.permute.xlu0 0
      %1291 = vperm.xlu0 %1290, %v1233
      %v1292 = vpop.permute.xlu0 %1291
      %1295 = vset.pattern.permute.xlu0 0
      %1296 = vperm.xlu0 %1295, %v1248
      %v1297 = vpop.permute.xlu0 %1296
      %1300 = vset.pattern.permute.xlu0 0
      %1301 = vperm.xlu0 %1300, %v1263
      %v1302 = vpop.permute.xlu0 %1301
      %v1304 = vmul.f32 %v928, %v1267
      %v1305 = vmul.f32 %v957, %v1267
      %v1306 = vmul.f32 %v930, %v1272
      %v1307 = vmul.f32 %v959, %v1272
      %v1308 = vmul.f32 %v933, %v1277
      %v1309 = vmul.f32 %v962, %v1277
      %v1310 = vmul.f32 %v935, %v1282
      %v1311 = vmul.f32 %v964, %v1282
      %v1312 = vmul.f32 %v938, %v1287
      %v1313 = vmul.f32 %v967, %v1287
      %v1314 = vmul.f32 %v940, %v1292
      %v1315 = vmul.f32 %v969, %v1292
      %v1316 = vmul.f32 %v943, %v1297
      %v1317 = vmul.f32 %v972, %v1297
      %v1318 = vmul.f32 %v945, %v1302
      %v1319 = vmul.f32 %v974, %v1302
      %v1320 = vadd.f32 %v1304, %v361
      %v1321 = vadd.f32 %v1305, %v362
      %v1322 = vadd.f32 %v1306, %v363
      %v1323 = vadd.f32 %v1307, %v364
      %v1324 = vadd.f32 %v1308, %v365
      %v1325 = vadd.f32 %v1309, %v366
      %v1326 = vadd.f32 %v1310, %v367
      %v1327 = vadd.f32 %v1311, %v368
      %v1328 = vadd.f32 %v1312, %v369
      %v1329 = vadd.f32 %v1313, %v370
      %v1330 = vadd.f32 %v1314, %v371
      %v1331 = vadd.f32 %v1315, %v372
      %v1332 = vadd.f32 %v1316, %v373
      %v1333 = vadd.f32 %v1317, %v374
      %v1334 = vadd.f32 %v1318, %v375
      %v1335 = vadd.f32 %v1319, %v376
      %v1336 = vmax.f32 %v1320, 0.0
      %v1337 = vmax.f32 %v1321, 0.0
      %v1338 = vmax.f32 %v1322, 0.0
      %v1339 = vmax.f32 %v1323, 0.0
      %v1340 = vmax.f32 %v1324, 0.0
      %v1341 = vmax.f32 %v1325, 0.0
      %v1342 = vmax.f32 %v1326, 0.0
      %v1343 = vmax.f32 %v1327, 0.0
      %v1344 = vmax.f32 %v1328, 0.0
      %v1345 = vmax.f32 %v1329, 0.0
      %v1346 = vmax.f32 %v1330, 0.0
      %v1347 = vmax.f32 %v1331, 0.0
      %v1348 = vmax.f32 %v1332, 0.0
      %v1349 = vmax.f32 %v1333, 0.0
      %v1350 = vmax.f32 %v1334, 0.0
      %v1351 = vmax.f32 %v1335, 0.0
      %1352 = vst [vmem:[%s359] sm:$0xff] %v1336
      %1353 = vst [vmem:[%s359 + $0x8] sm:$0xff] %v1337
      %1354 = vst [vmem:[%s359 + $0x10] sm:$0xff] %v1338
      %1355 = vst [vmem:[%s359 + $0x18] sm:$0xff] %v1339
      %1356 = vst [vmem:[%s359 + $0x20] sm:$0xff] %v1340
      %1357 = vst [vmem:[%s359 + $0x28] sm:$0xff] %v1341
      %1358 = vst [vmem:[%s359 + $0x30] sm:$0xff] %v1342
      %1359 = vst [vmem:[%s359 + $0x38] sm:$0xff] %v1343
      %1360 = vst [vmem:[%s359 + $0x40] sm:$0xff] %v1344
      %1361 = vst [vmem:[%s359 + $0x48] sm:$0xff] %v1345
      %1362 = vst [vmem:[%s359 + $0x50] sm:$0xff] %v1346
      %1363 = vst [vmem:[%s359 + $0x58] sm:$0xff] %v1347
      %1364 = vst [vmem:[%s359 + $0x60] sm:$0xff] %v1348
      %1365 = vst [vmem:[%s359 + $0x68] sm:$0xff] %v1349
      %1366 = vst [vmem:[%s359 + $0x70] sm:$0xff] %v1350
      %1367 = vst [vmem:[%s359 + $0x78] sm:$0xff] %v1351
      %p1368 = scmp.lt.s32.totalorder %s21, 1
      %s1369 = scalar_select %p1368, %s21, 1
      %s1370 = smul.addr %s1369, 16
      %s1371 = smul.addr %s1370, 8
      %s1372 = scalar_lea.vmem %s10, %s1371
      // Predicated region
      $region61: #{se_bottleneck_forward.1} parent=59 // pred_check
        %p1373 = pneg %p254
      $region62: #{se_bottleneck_forward.1} parent=59 // pred_check_branch
        %1375 = sbr.rel (%p1373) target = $region64
      $region63: #{se_bottleneck_forward.1} parent=59 // pred_region
        _
      $region64: #{se_bottleneck_forward.1} parent=59 // pred_fallthru
        _
    $region60: #{se_bottleneck_forward.1} parent=5 // pred_fallthru
      _
    %p1376 = scmp.le.s32.totalorder 2, %s16
    // Predicated region
    $region65: #{se_bottleneck_forward.1} parent=5 // pred_check
      %p1377 = pneg %p1376
    $region66: #{se_bottleneck_forward.1} parent=5 // pred_check_branch
      %1379 = sbr.rel (%p1377) target = $region68
    $region67: #{se_bottleneck_forward.1} parent=5 // pred_region
      %s1380 = ssub.s32 %s16, 2
      // Predicated region
      $region69: #{se_bottleneck_forward.1} parent=67 // pred_check
        %p1381 = pneg %p260
      $region70: #{se_bottleneck_forward.1} parent=67 // pred_check_branch
        %1383 = sbr.rel (%p1381) target = $region72
      $region71: #{se_bottleneck_forward.1} parent=67 // pred_region
        %p1384 = scmp.lt.s32.totalorder %s22, 1
        %s1385 = scalar_select %p1384, %s22, 1
        %s1386 = smul.addr %s1385, 16
        %s1387 = smul.addr %s1386, 8
        %s1388 = scalar_lea.vmem %s10, %s1387
      $region72: #{se_bottleneck_forward.1} parent=67 // pred_fallthru
        _
    $region68: #{se_bottleneck_forward.1} parent=5 // pred_fallthru
      _
  $region6: #{se_bottleneck_forward.1} parent=0 // loop_footer
    %s20 = sadd.s32 1, %s16
  $region7: #{se_bottleneck_forward.1} parent=0 // loop_footer_branch
    %15 = sbr.rel target = $region3
  $region8: #{se_bottleneck_forward.1} parent=0 // loop_exit
    _

</llo_original>
